<compile_context>
chip_gen: v7x
topology: tpu7x:2x2x1
jax: 0.10.0
libtpu: 0.0.40
codegen_flags: <defaults>
</compile_context>

<pallas_src>
import re
from typing import NamedTuple

import jax
import jax.numpy as jnp
from jax.experimental import pallas as pl
from jax.experimental.pallas import tpu as pltpu


# ----------------------------------------------------------------------------
# Small helpers
# ----------------------------------------------------------------------------
def _round_up(x, m):
    return (x + m - 1) // m * m


def _cdiv(a, b):
    return (a + b - 1) // b


def _tpu_generation():
    """Best-effort TPU generation (5, 6, 7, ...); defaults to 6 if unknown."""
    try:
        kind = jax.devices()[0].device_kind
        m = re.search(r"(\d+)", kind)
        if m:
            return int(m.group(1))
    except Exception:
        pass
    return 6


def _vmem_capacity_bytes(gen):
    try:
        info = pltpu.get_tpu_info()
        for attr in ("vmem_capacity_bytes", "vmem_size_bytes"):
            cap = getattr(info, attr, None)
            if cap:
                return int(cap)
    except Exception:
        pass
    return (64 << 20) if gen >= 7 else (128 << 20)


def _row_align(dtype):
    # f32 -> 8 sublanes, bf16 -> 16, int8/fp8 -> 32 (min tile second-minor dim).
    return max(8, 32 // jnp.dtype(dtype).itemsize)


def _pick_tile(dim_p, prefer):
    for c in prefer:
        if dim_p % c == 0:
            return c
    return dim_p  # dim_p is a multiple of 128, so this is unreachable in practice


def _pick_tm(m, compute_dtype, max_dim_p, gen, tm=None):
    align = _row_align(compute_dtype)
    if tm is None:
        if gen >= 7:
            # v7x: 64 MiB VMEM -> cap the f32 intermediate-activation scratch.
            tm = 128 if max_dim_p >= 4096 else 256
        else:
            # Single TC (v5e/v6e): fewer, larger steps amortize ~0.35 us/step.
            tm = 512
    tm = max(align, _round_up(tm, align))
    if gen >= 7 and m > align:
        # Guarantee >= 2 "parallel" batch steps so both TensorCores get work.
        tm = min(tm, _round_up(_cdiv(m, 2), align))
    else:
        tm = min(tm, _round_up(m, align))  # don't over-pad tiny batches
    return tm


# ----------------------------------------------------------------------------
# Parameter preparation (done ONCE, outside the per-call hot path)
# ----------------------------------------------------------------------------
class PreparedMLP(NamedTuple):
    dims: tuple          # true feature sizes (d0, ..., dL)
    dims_p: tuple        # lane-dense padded sizes (multiples of 128)
    weights: tuple       # padded (Kp, Np) arrays in compute dtype
    biases: tuple        # padded (1, Np) float32 arrays
    compute_dtype: jnp.dtype


def prepare_mlp_params(params, compute_dtype=jnp.float32):
    """Pad weights/biases once; cache & reuse across forward calls.

    params: list of (W, b) with W of shape (d_in, d_out) (nn.Linear weight
    transposed) and b of shape (d_out,).  Zero padding of rows/cols leaves the
    math unchanged and makes every matmul operand / output store lane-dense.
    """
    # TODO(synk): on v6e/v7x with bf16 weights, padding wide layers to 256
    # multiples could better fill the 2x256x256 MXU; kept at 128 here.
    dims = [params[0][0].shape[0]] + [w.shape[1] for w, _ in params]
    dims_p = [_round_up(d, 128) for d in dims]
    ws, bs = [], []
    for l, (w, b) in enumerate(params):
        assert w.shape == (dims[l], dims[l + 1]) and b.shape == (dims[l + 1],)
        ws.append(jnp.pad(
            w.astype(compute_dtype),
            ((0, dims_p[l] - dims[l]), (0, dims_p[l + 1] - dims[l + 1]))))
        bs.append(jnp.pad(
            b.astype(jnp.float32),
            (0, dims_p[l + 1] - dims[l + 1])).reshape(1, dims_p[l + 1]))
    return PreparedMLP(tuple(dims), tuple(dims_p), tuple(ws), tuple(bs),
                       jnp.dtype(compute_dtype))


# ----------------------------------------------------------------------------
# Kernels
# ----------------------------------------------------------------------------
def _make_fused_mlp_kernel(num_layers):
    """Fused kernel: args are x_ref, (w_ref, b_ref) * L, out_ref."""

    def kernel(x_ref, *refs):
        out_ref = refs[-1]
        h = x_ref[...]                                 # (tm, D0p), compute dtype
        for l in range(num_layers):
            w_ref = refs[2 * l]
            b_ref = refs[2 * l + 1]
            # MXU matmul with f32 accumulation.
            y = jnp.dot(h, w_ref[...], preferred_element_type=jnp.float32)
            # Bias add + ReLU in f32 (cheap VPU epilogue; f32 even on bf16 path).
            h = jnp.maximum(y + b_ref[...], 0.0)
            if l < num_layers - 1:
                h = h.astype(w_ref.dtype)              # back to compute dtype for the MXU
        out_ref[...] = h.astype(out_ref.dtype)

    return kernel


def _linear_relu_kernel(x_ref, w_ref, b_ref, o_ref, acc_ref):
    """Streamed per-layer kernel: y = relu(x @ W + b) with K innermost."""
    @pl.when(pl.program_id(2) == 0)
    def _():
        acc_ref[...] = jnp.zeros_like(acc_ref)

    acc_ref[...] += jnp.dot(x_ref[...], w_ref[...],
                            preferred_element_type=jnp.float32)

    @pl.when(pl.program_id(2) == pl.num_programs(2) - 1)
    def _():
        o_ref[...] = jnp.maximum(acc_ref[...] + b_ref[...], 0.0).astype(o_ref.dtype)


# ----------------------------------------------------------------------------
# Call paths
# ----------------------------------------------------------------------------
def _fused_call(x_p, prepared, tm, m_p, out_dtype, est, vmem_cap):
    dims_p = prepared.dims_p
    num_layers = len(prepared.weights)

    in_specs = [pl.BlockSpec((tm, dims_p[0]), lambda i: (i, 0))]
    flat_wb = []
    for w, b in zip(prepared.weights, prepared.biases):
        flat_wb += [w, b]
        # Grid-invariant operands: whole-array, SINGLE-buffered, VMEM-resident.
        in_specs.append(pl.BlockSpec(memory_space=pltpu.MemorySpace.VMEM))
        in_specs.append(pl.BlockSpec(memory_space=pltpu.MemorySpace.VMEM))
    out_specs = pl.BlockSpec((tm, dims_p[-1]), lambda i: (i, 0))

    # Only raise the scoped VMEM limit when the default would not fit; leave
    # ~15% of physical VMEM as headroom for Mosaic scratch / semaphores.
    vmem_limit = None
    if est > (16 << 20):
        vmem_limit = min(int(est * 1.25) + (2 << 20), int(vmem_cap * 0.85))

    flops = 2 * m_p * sum(dims_p[l] * dims_p[l + 1] for l in range(num_layers))
    bytes_accessed = (x_p.nbytes
                      + m_p * dims_p[-1] * jnp.dtype(out_dtype).itemsize
                      + sum(a.nbytes for a in flat_wb))
    cost = pl.CostEstimate(flops=flops, transcendentals=0,
                           bytes_accessed=bytes_accessed)

    return pl.pallas_call(
        _make_fused_mlp_kernel(num_layers),
        out_shape=jax.ShapeDtypeStruct((m_p, dims_p[-1]), out_dtype),
        grid=(m_p // tm,),
        in_specs=in_specs,
        out_specs=out_specs,
        compiler_params=pltpu.CompilerParams(
            dimension_semantics=("parallel",),
            vmem_limit_bytes=vmem_limit),
        cost_estimate=cost,
    )(x_p, *flat_wb)


def _streamed_call(x_p, prepared, tm, m_p, out_dtype, gen):
    """Per-layer tiled matmul+bias+ReLU for models whose weights exceed VMEM."""
    # TODO(synk): inter-layer activations round-trip through HBM here; a fully
    # fused streamed variant would need a per-layer N/K pipeline inside one call.
    dims_p = prepared.dims_p
    cdt = prepared.compute_dtype
    num_layers = len(prepared.weights)
    h = x_p
    for l, (w, b) in enumerate(zip(prepared.weights, prepared.biases)):
        kp, np_ = dims_p[l], dims_p[l + 1]
        tk = _pick_tile(kp, (512, 256, 128))
        # v7x: 256-wide weight column tiles are cheap at ~3.2 TB/s HBM.
        tn = _pick_tile(np_, (256, 128)) if gen >= 7 else _pick_tile(np_, (512, 256, 128))
        layer_out_dtype = out_dtype if l == num_layers - 1 else cdt
        flops = 2 * m_p * kp * np_
        bytes_accessed = (h.nbytes + w.nbytes + b.nbytes
                          + m_p * np_ * jnp.dtype(layer_out_dtype).itemsize)
        h = pl.pallas_call(
            _linear_relu_kernel,
            out_shape=jax.ShapeDtypeStruct((m_p, np_), layer_out_dtype),
            grid=(m_p // tm, np_ // tn, kp // tk),
            in_specs=[pl.BlockSpec((tm, tk), lambda i, j, k: (i, k)),
                      pl.BlockSpec((tk, tn), lambda i, j, k: (k, j)),
                      pl.BlockSpec((1, tn), lambda i, j, k: (0, j))],
            out_specs=pl.BlockSpec((tm, tn), lambda i, j, k: (i, j)),
            scratch_shapes=[pltpu.VMEM((tm, tn), jnp.float32)],
            compiler_params=pltpu.CompilerParams(
                dimension_semantics=("parallel", "parallel", "arbitrary")),
            cost_estimate=pl.CostEstimate(flops=flops, transcendentals=0,
                                          bytes_accessed=bytes_accessed),
        )(h, w, b)
    return h


def mlp_forward(x, params, *, tm=None, compute_dtype=jnp.float32, mode="auto"):
    """relu(... relu(relu(x @ W0 + b0) @ W1 + b1) ...) via Pallas TPU kernels.

    params: either a raw list of (W, b) pairs (padded on the fly) or a
    PreparedMLP from prepare_mlp_params() (preferred: pads once, reuse).
    mode: "auto" (fused when weights fit VMEM, else streamed), "fused",
    or "streamed".
    """
    prepared = params if isinstance(params, PreparedMLP) else \
        prepare_mlp_params(params, compute_dtype)
    cdt = prepared.compute_dtype
    dims, dims_p = prepared.dims, prepared.dims_p
    orig_shape = x.shape
    out_dtype = x.dtype
    d0 = orig_shape[-1]
    assert d0 == dims[0], (d0, dims[0])
    x2 = x.reshape(-1, d0)
    m = x2.shape[0]

    gen = _tpu_generation()
    vmem_cap = _vmem_capacity_bytes(gen)
    tm = _pick_tm(m, cdt, max(dims_p), gen, tm)
    m_p = _round_up(max(m, 1), tm)

    # Pad the activations only when actually needed (hot-path hygiene).
    x_c = x2.astype(cdt)
    if m_p != m or dims_p[0] != d0:
        x_c = jnp.pad(x_c, ((0, m_p - m), (0, dims_p[0] - d0)))

    # VMEM estimate for the fused path: double-buffered x/out tiles,
    # SINGLE-buffered resident weights/biases, f32 intermediates.
    csz = jnp.dtype(cdt).itemsize
    osz = jnp.dtype(out_dtype).itemsize
    wb_bytes = sum(w.nbytes + b.nbytes
                   for w, b in zip(prepared.weights, prepared.biases))
    est = (2 * tm * dims_p[0] * csz
           + 2 * tm * dims_p[-1] * osz
           + wb_bytes
           + 2 * tm * max(dims_p) * 4)

    if mode == "auto":
        mode = "fused" if est <= int(0.70 * vmem_cap) else "streamed"

    if mode == "fused":
        out_p = _fused_call(x_c, prepared, tm, m_p, out_dtype, est, vmem_cap)
    elif mode == "streamed":
        out_p = _streamed_call(x_c, prepared, tm, m_p, out_dtype, gen)
    else:
        raise ValueError(f"unknown mode {mode!r}")

    out = out_p[:m, :dims[-1]]
    return out.reshape(orig_shape[:-1] + (dims[-1],))


# ----------------------------------------------------------------------------
# Reference / init helpers
# ----------------------------------------------------------------------------
def init_mlp_params(key, sizes):
    """Deterministic init mirroring nn.Linear's default (uniform +/- 1/sqrt(fan_in))."""
    params = []
    for d_in, d_out in zip(sizes[:-1], sizes[1:]):
        key, kw, kb = jax.random.split(key, 3)
        bound = 1.0 / jnp.sqrt(d_in)
        w = jax.random.uniform(kw, (d_in, d_out), jnp.float32, -bound, bound)
        b = jax.random.uniform(kb, (d_out,), jnp.float32, -bound, bound)
        params.append((w, b))
    return params


def mlp_reference(x, params):
    for w, b in params:
        x = jnp.maximum(x @ w + b, 0.0)
    return x


if __name__ == "__main__":
    key = jax.random.PRNGKey(0)
    sizes = [32, 64, 48, 16]          # MLP([32, 64, 48, 16])
    batch = 512

    k_x, k_p = jax.random.split(key)
    x = jax.random.normal(k_x, (batch, sizes[0]), jnp.float32)
    params = init_mlp_params(k_p, sizes)
    ref = mlp_reference(x, params)

    # Pre-pad once, reuse across calls (padding out of the hot path).
    prep_f32 = prepare_mlp_params(params, jnp.float32)
    prep_bf16 = prepare_mlp_params(params, jnp.bfloat16)

    # Fused f32 path: exact match (padding only adds zeros).
    out = jax.block_until_ready(mlp_forward(x, prep_f32))
    assert out.shape == (batch, sizes[-1])
    assert jnp.allclose(out, ref, atol=1e-5, rtol=1e-5)

    # Streamed fallback path (exercised explicitly so the big-model path is
    # compile-checked too): also exact for f32.
    out_s = jax.block_until_ready(mlp_forward(x, prep_f32, mode="streamed"))
    assert out_s.shape == (batch, sizes[-1])
    assert jnp.allclose(out_s, ref, atol=1e-5, rtol=1e-5)

    # bf16-on-MXU path (valid on v5e/v6e/v7x): f32 accumulate + f32 epilogue.
    out_bf16 = jax.block_until_ready(mlp_forward(x, prep_bf16))
    assert out_bf16.shape == (batch, sizes[-1])
    max_err = float(jnp.max(jnp.abs(out_bf16.astype(jnp.float32) - ref)))
    assert max_err < 0.1, max_err   # inference-grade tolerance for bf16 activations

    print("KERNEL_OK")
</pallas_src>

<mosaic_0001>
module attributes {stable_mosaic.version = 11 : i64} {
  func.func @kernel(%arg0: i32, %arg1: memref<512x128xf32, #tpu.memory_space<vmem>>, %arg2: memref<128x128xf32, #tpu.memory_space<vmem>>, %arg3: memref<1x128xf32, #tpu.memory_space<vmem>>, %arg4: memref<128x128xf32, #tpu.memory_space<vmem>>, %arg5: memref<1x128xf32, #tpu.memory_space<vmem>>, %arg6: memref<128x128xf32, #tpu.memory_space<vmem>>, %arg7: memref<1x128xf32, #tpu.memory_space<vmem>>, %arg8: memref<512x128xf32, #tpu.memory_space<vmem>>) attributes {dimension_semantics = [#tpu.dimension_semantics<parallel>], iteration_bounds = array<i64: 1>, scalar_prefetch = 0 : i64, scratch_operands = 0 : i64, tpu.core_type = #tpu.core_type<tc>, window_params = [{transform_indices = @transform_0, window_bounds = array<i64: 512, 128>}, {pipeline_mode = #tpu.pipeline_mode<synchronous>, transform_indices = @transform_1, window_bounds = array<i64: 128, 128>}, {pipeline_mode = #tpu.pipeline_mode<synchronous>, transform_indices = @transform_2, window_bounds = array<i64: 1, 128>}, {pipeline_mode = #tpu.pipeline_mode<synchronous>, transform_indices = @transform_3, window_bounds = array<i64: 128, 128>}, {pipeline_mode = #tpu.pipeline_mode<synchronous>, transform_indices = @transform_4, window_bounds = array<i64: 1, 128>}, {pipeline_mode = #tpu.pipeline_mode<synchronous>, transform_indices = @transform_5, window_bounds = array<i64: 128, 128>}, {pipeline_mode = #tpu.pipeline_mode<synchronous>, transform_indices = @transform_6, window_bounds = array<i64: 1, 128>}, {transform_indices = @transform_7, window_bounds = array<i64: 512, 128>}]} {
    %c0 = arith.constant 0 : index
    %c0_0 = arith.constant 0 : index
    %0 = vector.load %arg1[%c0, %c0_0] : memref<512x128xf32, #tpu.memory_space<vmem>>, vector<512x128xf32>
    %c0_1 = arith.constant 0 : index
    %c0_2 = arith.constant 0 : index
    %1 = vector.load %arg2[%c0_1, %c0_2] : memref<128x128xf32, #tpu.memory_space<vmem>>, vector<128x128xf32>
    %cst = arith.constant dense<0.000000e+00> : vector<512x128xf32>
    %2 = tpu.matmul %0, %1, %cst {dimension_numbers = #tpu.dot_dimension_numbers<[1], [0], [0], [1], [0, 0, 1, 1], [], []>} : vector<512x128xf32>, vector<128x128xf32>, vector<512x128xf32> -> vector<512x128xf32>
    %c0_3 = arith.constant 0 : index
    %c0_4 = arith.constant 0 : index
    %3 = vector.load %arg3[%c0_3, %c0_4] : memref<1x128xf32, #tpu.memory_space<vmem>>, vector<1x128xf32>
    %4 = vector.broadcast %3 : vector<1x128xf32> to vector<512x128xf32>
    %5 = arith.addf %2, %4 : vector<512x128xf32>
    %cst_5 = arith.constant 0.000000e+00 : f32
    %6 = vector.broadcast %cst_5 : f32 to vector<512x128xf32>
    %7 = arith.maximumf %5, %6 : vector<512x128xf32>
    %c0_6 = arith.constant 0 : index
    %c0_7 = arith.constant 0 : index
    %8 = vector.load %arg4[%c0_6, %c0_7] : memref<128x128xf32, #tpu.memory_space<vmem>>, vector<128x128xf32>
    %cst_8 = arith.constant dense<0.000000e+00> : vector<512x128xf32>
    %9 = tpu.matmul %7, %8, %cst_8 {dimension_numbers = #tpu.dot_dimension_numbers<[1], [0], [0], [1], [0, 0, 1, 1], [], []>} : vector<512x128xf32>, vector<128x128xf32>, vector<512x128xf32> -> vector<512x128xf32>
    %c0_9 = arith.constant 0 : index
    %c0_10 = arith.constant 0 : index
    %10 = vector.load %arg5[%c0_9, %c0_10] : memref<1x128xf32, #tpu.memory_space<vmem>>, vector<1x128xf32>
    %11 = vector.broadcast %10 : vector<1x128xf32> to vector<512x128xf32>
    %12 = arith.addf %9, %11 : vector<512x128xf32>
    %cst_11 = arith.constant 0.000000e+00 : f32
    %13 = vector.broadcast %cst_11 : f32 to vector<512x128xf32>
    %14 = arith.maximumf %12, %13 : vector<512x128xf32>
    %c0_12 = arith.constant 0 : index
    %c0_13 = arith.constant 0 : index
    %15 = vector.load %arg6[%c0_12, %c0_13] : memref<128x128xf32, #tpu.memory_space<vmem>>, vector<128x128xf32>
    %cst_14 = arith.constant dense<0.000000e+00> : vector<512x128xf32>
    %16 = tpu.matmul %14, %15, %cst_14 {dimension_numbers = #tpu.dot_dimension_numbers<[1], [0], [0], [1], [0, 0, 1, 1], [], []>} : vector<512x128xf32>, vector<128x128xf32>, vector<512x128xf32> -> vector<512x128xf32>
    %c0_15 = arith.constant 0 : index
    %c0_16 = arith.constant 0 : index
    %17 = vector.load %arg7[%c0_15, %c0_16] : memref<1x128xf32, #tpu.memory_space<vmem>>, vector<1x128xf32>
    %18 = vector.broadcast %17 : vector<1x128xf32> to vector<512x128xf32>
    %19 = arith.addf %16, %18 : vector<512x128xf32>
    %cst_17 = arith.constant 0.000000e+00 : f32
    %20 = vector.broadcast %cst_17 : f32 to vector<512x128xf32>
    %21 = arith.maximumf %19, %20 : vector<512x128xf32>
    %c0_18 = arith.constant 0 : index
    %c0_19 = arith.constant 0 : index
    %22 = vector.load %arg8[%c0_18, %c0_19] : memref<512x128xf32, #tpu.memory_space<vmem>>, vector<512x128xf32>
    tpu.vector_store %arg8[%c0_18, %c0_19], %21 {strides = array<i32>} : memref<512x128xf32, #tpu.memory_space<vmem>>, vector<512x128xf32>,
    return
  }
  func.func @transform_0(%arg0: i32) -> (i32, i32) {
    %c0_i32 = arith.constant 0 : i32
    %c0_i32_0 = arith.constant 0 : i32
    return %arg0, %c0_i32 : i32, i32
  }
  func.func @transform_1(%arg0: i32) -> (i32, i32) {
    %c0_i32 = arith.constant 0 : i32
    %c0_i32_0 = arith.constant 0 : i32
    %c0_i32_1 = arith.constant 0 : i32
    return %c0_i32, %c0_i32_0 : i32, i32
  }
  func.func @transform_2(%arg0: i32) -> (i32, i32) {
    %c0_i32 = arith.constant 0 : i32
    %c0_i32_0 = arith.constant 0 : i32
    %c0_i32_1 = arith.constant 0 : i32
    return %c0_i32, %c0_i32_0 : i32, i32
  }
  func.func @transform_3(%arg0: i32) -> (i32, i32) {
    %c0_i32 = arith.constant 0 : i32
    %c0_i32_0 = arith.constant 0 : i32
    %c0_i32_1 = arith.constant 0 : i32
    return %c0_i32, %c0_i32_0 : i32, i32
  }
  func.func @transform_4(%arg0: i32) -> (i32, i32) {
    %c0_i32 = arith.constant 0 : i32
    %c0_i32_0 = arith.constant 0 : i32
    %c0_i32_1 = arith.constant 0 : i32
    return %c0_i32, %c0_i32_0 : i32, i32
  }
  func.func @transform_5(%arg0: i32) -> (i32, i32) {
    %c0_i32 = arith.constant 0 : i32
    %c0_i32_0 = arith.constant 0 : i32
    %c0_i32_1 = arith.constant 0 : i32
    return %c0_i32, %c0_i32_0 : i32, i32
  }
  func.func @transform_6(%arg0: i32) -> (i32, i32) {
    %c0_i32 = arith.constant 0 : i32
    %c0_i32_0 = arith.constant 0 : i32
    %c0_i32_1 = arith.constant 0 : i32
    return %c0_i32, %c0_i32_0 : i32, i32
  }
  func.func @transform_7(%arg0: i32) -> (i32, i32) {
    %c0_i32 = arith.constant 0 : i32
    %c0_i32_0 = arith.constant 0 : i32
    return %arg0, %c0_i32 : i32, i32
  }
}

</mosaic_0001>

<llo_original>
// kernel: tpu_custom_call.1
$region0: #{tpu_custom_call.1}
  #allocation0 [shape = 'u32[]', space=smem, size = 0x4, offset = 0x4, fixed_abs, tag = 'smem constant byte address 0x4 - core index']
  #allocation1 [shape = 'u32[144,128]{1,0:T(1,128)}', space=vmem, size = 0x12000, scoped, tag = 'internal scratch']
  %s0 = inlined_call_operand.hbm [shape: f32[512,128], index: 0, kind: input, shape index: {}]
  %s1 = inlined_call_operand.hbm [shape: f32[128,128], index: 1, kind: input, shape index: {}]
  %s2 = inlined_call_operand.vmem [shape: f32[1,128], index: 2, kind: input, shape index: {}]
  %s3 = inlined_call_operand.hbm [shape: f32[128,128], index: 3, kind: input, shape index: {}]
  %s4 = inlined_call_operand.vmem [shape: f32[1,128], index: 4, kind: input, shape index: {}]
  %s5 = inlined_call_operand.hbm [shape: f32[128,128], index: 5, kind: input, shape index: {}]
  %s6 = inlined_call_operand.vmem [shape: f32[1,128], index: 6, kind: input, shape index: {}]
  %s7 = inlined_call_operand.hbm [shape: f32[512,128], index: 7, kind: output, shape index: {}]
  %s8 = sld [smem:[#allocation0]]
  $region54: #{tpu_custom_call.1} parent=0
    _
  %s10 = ssub.s32 1, %s8
  %s11 = scalar_select 0, %s10, %s8
  $region1: #{tpu_custom_call.1} parent=0
    #allocation2 [shape = 'u8[262144]{0}', space=vmem, size = 0x40000, scoped, tag = 'input window, operand 0, single buffered']
    #allocation3 [shape = 's32[1]{0}', space=sflag, size = 0x4, scoped, tag = 'scoped memory for tpu_custom_call.1']
    #allocation4 [shape = 's32[1]{0}', space=sflag, size = 0x4, scoped, tag = 'scoped memory for tpu_custom_call.1']
    #allocation5 [shape = 'u8[65536]{0}', space=vmem, size = 0x10000, scoped, tag = 'input window, operand 1, single buffered']
    #allocation6 [shape = 's32[1]{0}', space=sflag, size = 0x4, scoped, tag = 'scoped memory for tpu_custom_call.1']
    #allocation7 [shape = 'u8[65536]{0}', space=vmem, size = 0x10000, scoped, tag = 'input window, operand 3, single buffered']
    #allocation8 [shape = 'u8[65536]{0}', space=vmem, size = 0x10000, scoped, tag = 'input window, operand 5, single buffered']
    #allocation9 [shape = 's32[1]{0}', space=sflag, size = 0x4, scoped, tag = 'scoped memory for tpu_custom_call.1']
    #allocation10 [shape = 'u8[262144]{0}', space=vmem, size = 0x40000, scoped, tag = 'output window, operand 0, single buffered']
    %12 = vsyncpa [#allocation3], 0
    %13 = vsyncpa [#allocation6], 0
    %14 = vsyncpa [#allocation9], 0
    %15 = vsyncpa [#allocation4], 0
    // Predicated region
    $region2: #{tpu_custom_call.1} parent=1 // pred_check
      _
    $region3: #{tpu_custom_call.1} parent=1 // pred_check_branch
      %17 = sbr.rel (0) target = $region5
    $region4: #{tpu_custom_call.1} parent=1 // pred_region
      %s19 = ssub.s32 8192, 8192
      %20 = vsyncadd [#allocation3], %s19
      %s21 = sshll.u32 [#allocation2], 4
      %s22 = int_to_ptr.vmem [resolvable:$true] %s21
      %27 = dma.hbm_to_vmem [thread:$0]  %s0, 8192, %s22, [#allocation3], 128, 128, 8
    $region5: #{tpu_custom_call.1} parent=1 // pred_fallthru
      _
    // Predicated region
    $region6: #{tpu_custom_call.1} parent=1 // pred_check
      _
    $region7: #{tpu_custom_call.1} parent=1 // pred_check_branch
      %29 = sbr.rel (0) target = $region9
    $region8: #{tpu_custom_call.1} parent=1 // pred_region
      %s31 = ssub.s32 2048, 2048
      %32 = vsyncadd [#allocation6], %s31
      %s33 = sshll.u32 [#allocation5], 4
      %s34 = int_to_ptr.vmem [resolvable:$true] %s33
      %39 = dma.hbm_to_vmem [thread:$0]  %s1, 2048, %s34, [#allocation6], 128, 128, 8
    $region9: #{tpu_custom_call.1} parent=1 // pred_fallthru
      _
    // Predicated region
    $region10: #{tpu_custom_call.1} parent=1 // pred_check
      _
    $region11: #{tpu_custom_call.1} parent=1 // pred_check_branch
      %41 = sbr.rel (0) target = $region13
    $region12: #{tpu_custom_call.1} parent=1 // pred_region
      _
    $region13: #{tpu_custom_call.1} parent=1 // pred_fallthru
      _
    // Predicated region
    $region14: #{tpu_custom_call.1} parent=1 // pred_check
      _
    $region15: #{tpu_custom_call.1} parent=1 // pred_check_branch
      %43 = sbr.rel (0) target = $region17
    $region16: #{tpu_custom_call.1} parent=1 // pred_region
      %s45 = ssub.s32 2048, 2048
      %46 = vsyncadd [#allocation6], %s45
      %s47 = sshll.u32 [#allocation7], 4
      %s48 = int_to_ptr.vmem [resolvable:$true] %s47
      %53 = dma.hbm_to_vmem [thread:$0]  %s3, 2048, %s48, [#allocation6], 128, 128, 8
    $region17: #{tpu_custom_call.1} parent=1 // pred_fallthru
      _
    // Predicated region
    $region18: #{tpu_custom_call.1} parent=1 // pred_check
      _
    $region19: #{tpu_custom_call.1} parent=1 // pred_check_branch
      %55 = sbr.rel (0) target = $region21
    $region20: #{tpu_custom_call.1} parent=1 // pred_region
      _
    $region21: #{tpu_custom_call.1} parent=1 // pred_fallthru
      _
    // Predicated region
    $region22: #{tpu_custom_call.1} parent=1 // pred_check
      _
    $region23: #{tpu_custom_call.1} parent=1 // pred_check_branch
      %57 = sbr.rel (0) target = $region25
    $region24: #{tpu_custom_call.1} parent=1 // pred_region
      %s59 = ssub.s32 2048, 2048
      %60 = vsyncadd [#allocation9], %s59
      %s61 = sshll.u32 [#allocation8], 4
      %s62 = int_to_ptr.vmem [resolvable:$true] %s61
      %67 = dma.hbm_to_vmem [thread:$0]  %s5, 2048, %s62, [#allocation9], 128, 128, 8
    $region25: #{tpu_custom_call.1} parent=1 // pred_fallthru
      _
    // Predicated region
    $region26: #{tpu_custom_call.1} parent=1 // pred_check
      _
    $region27: #{tpu_custom_call.1} parent=1 // pred_check_branch
      %69 = sbr.rel (0) target = $region29
    $region28: #{tpu_custom_call.1} parent=1 // pred_region
      _
    $region29: #{tpu_custom_call.1} parent=1 // pred_fallthru
      _
    // Predicated region
    $region30: #{tpu_custom_call.1} parent=1 // pred_check
      _
    $region31: #{tpu_custom_call.1} parent=1 // pred_check_branch
      %71 = sbr.rel (0) target = $region33
    $region32: #{tpu_custom_call.1} parent=1 // pred_region
      %72 = dma.done [#allocation3], 8192
    $region33: #{tpu_custom_call.1} parent=1 // pred_fallthru
      _
    // Predicated region
    $region34: #{tpu_custom_call.1} parent=1 // pred_check
      _
    $region35: #{tpu_custom_call.1} parent=1 // pred_check_branch
      %74 = sbr.rel (0) target = $region37
    $region36: #{tpu_custom_call.1} parent=1 // pred_region
      %75 = dma.done [#allocation6], 2048
    $region37: #{tpu_custom_call.1} parent=1 // pred_fallthru
      _
    // Predicated region
    $region38: #{tpu_custom_call.1} parent=1 // pred_check
      _
    $region39: #{tpu_custom_call.1} parent=1 // pred_check_branch
      %77 = sbr.rel (0) target = $region41
    $region40: #{tpu_custom_call.1} parent=1 // pred_region
      %78 = dma.done [#allocation6], 2048
    $region41: #{tpu_custom_call.1} parent=1 // pred_fallthru
      _
    // Predicated region
    $region42: #{tpu_custom_call.1} parent=1 // pred_check
      _
    $region43: #{tpu_custom_call.1} parent=1 // pred_check_branch
      %80 = sbr.rel (0) target = $region45
    $region44: #{tpu_custom_call.1} parent=1 // pred_region
      %81 = dma.done [#allocation9], 2048
    $region45: #{tpu_custom_call.1} parent=1 // pred_fallthru
      _
    %v82 = vld [vmem:[#allocation2] sm:$0xff]
    %v83 = vld [vmem:[#allocation2 + $0x8] sm:$0xff]
    %v84 = vld [vmem:[#allocation2 + $0x10] sm:$0xff]
    %v85 = vld [vmem:[#allocation2 + $0x18] sm:$0xff]
    %v86 = vld [vmem:[#allocation2 + $0x20] sm:$0xff]
    %v87 = vld [vmem:[#allocation2 + $0x28] sm:$0xff]
    %v88 = vld [vmem:[#allocation2 + $0x30] sm:$0xff]
    %v89 = vld [vmem:[#allocation2 + $0x38] sm:$0xff]
    %v90 = vld [vmem:[#allocation2 + $0x40] sm:$0xff]
    %v91 = vld [vmem:[#allocation2 + $0x48] sm:$0xff]
    %v92 = vld [vmem:[#allocation2 + $0x50] sm:$0xff]
    %v93 = vld [vmem:[#allocation2 + $0x58] sm:$0xff]
    %v94 = vld [vmem:[#allocation2 + $0x60] sm:$0xff]
    %v95 = vld [vmem:[#allocation2 + $0x68] sm:$0xff]
    %v96 = vld [vmem:[#allocation2 + $0x70] sm:$0xff]
    %v97 = vld [vmem:[#allocation2 + $0x78] sm:$0xff]
    %v98 = vld [vmem:[#allocation2 + $0x80] sm:$0xff]
    %v99 = vld [vmem:[#allocation2 + $0x88] sm:$0xff]
    %v100 = vld [vmem:[#allocation2 + $0x90] sm:$0xff]
    %v101 = vld [vmem:[#allocation2 + $0x98] sm:$0xff]
    %v102 = vld [vmem:[#allocation2 + $0xa0] sm:$0xff]
    %v103 = vld [vmem:[#allocation2 + $0xa8] sm:$0xff]
    %v104 = vld [vmem:[#allocation2 + $0xb0] sm:$0xff]
    %v105 = vld [vmem:[#allocation2 + $0xb8] sm:$0xff]
    %v106 = vld [vmem:[#allocation2 + $0xc0] sm:$0xff]
    %v107 = vld [vmem:[#allocation2 + $0xc8] sm:$0xff]
    %v108 = vld [vmem:[#allocation2 + $0xd0] sm:$0xff]
    %v109 = vld [vmem:[#allocation2 + $0xd8] sm:$0xff]
    %v110 = vld [vmem:[#allocation2 + $0xe0] sm:$0xff]
    %v111 = vld [vmem:[#allocation2 + $0xe8] sm:$0xff]
    %v112 = vld [vmem:[#allocation2 + $0xf0] sm:$0xff]
    %v113 = vld [vmem:[#allocation2 + $0xf8] sm:$0xff]
    %v114 = vld [vmem:[#allocation2 + $0x100] sm:$0xff]
    %v115 = vld [vmem:[#allocation2 + $0x108] sm:$0xff]
    %v116 = vld [vmem:[#allocation2 + $0x110] sm:$0xff]
    %v117 = vld [vmem:[#allocation2 + $0x118] sm:$0xff]
    %v118 = vld [vmem:[#allocation2 + $0x120] sm:$0xff]
    %v119 = vld [vmem:[#allocation2 + $0x128] sm:$0xff]
    %v120 = vld [vmem:[#allocation2 + $0x130] sm:$0xff]
    %v121 = vld [vmem:[#allocation2 + $0x138] sm:$0xff]
    %v122 = vld [vmem:[#allocation2 + $0x140] sm:$0xff]
    %v123 = vld [vmem:[#allocation2 + $0x148] sm:$0xff]
    %v124 = vld [vmem:[#allocation2 + $0x150] sm:$0xff]
    %v125 = vld [vmem:[#allocation2 + $0x158] sm:$0xff]
    %v126 = vld [vmem:[#allocation2 + $0x160] sm:$0xff]
    %v127 = vld [vmem:[#allocation2 + $0x168] sm:$0xff]
    %v128 = vld [vmem:[#allocation2 + $0x170] sm:$0xff]
    %v129 = vld [vmem:[#allocation2 + $0x178] sm:$0xff]
    %v130 = vld [vmem:[#allocation2 + $0x180] sm:$0xff]
    %v131 = vld [vmem:[#allocation2 + $0x188] sm:$0xff]
    %v132 = vld [vmem:[#allocation2 + $0x190] sm:$0xff]
    %v133 = vld [vmem:[#allocation2 + $0x198] sm:$0xff]
    %v134 = vld [vmem:[#allocation2 + $0x1a0] sm:$0xff]
    %v135 = vld [vmem:[#allocation2 + $0x1a8] sm:$0xff]
    %v136 = vld [vmem:[#allocation2 + $0x1b0] sm:$0xff]
    %v137 = vld [vmem:[#allocation2 + $0x1b8] sm:$0xff]
    %v138 = vld [vmem:[#allocation2 + $0x1c0] sm:$0xff]
    %v139 = vld [vmem:[#allocation2 + $0x1c8] sm:$0xff]
    %v140 = vld [vmem:[#allocation2 + $0x1d0] sm:$0xff]
    %v141 = vld [vmem:[#allocation2 + $0x1d8] sm:$0xff]
    %v142 = vld [vmem:[#allocation2 + $0x1e0] sm:$0xff]
    %v143 = vld [vmem:[#allocation2 + $0x1e8] sm:$0xff]
    %v144 = vld [vmem:[#allocation2 + $0x1f0] sm:$0xff]
    %v145 = vld [vmem:[#allocation2 + $0x1f8] sm:$0xff]
    %v146 = vld [vmem:[#allocation5] sm:$0xff]
    %v147 = vld [vmem:[#allocation5 + $0x8] sm:$0xff]
    %v148 = vld [vmem:[#allocation5 + $0x10] sm:$0xff]
    %v149 = vld [vmem:[#allocation5 + $0x18] sm:$0xff]
    %v150 = vld [vmem:[#allocation5 + $0x20] sm:$0xff]
    %v151 = vld [vmem:[#allocation5 + $0x28] sm:$0xff]
    %v152 = vld [vmem:[#allocation5 + $0x30] sm:$0xff]
    %v153 = vld [vmem:[#allocation5 + $0x38] sm:$0xff]
    %v154 = vld [vmem:[#allocation5 + $0x40] sm:$0xff]
    %v155 = vld [vmem:[#allocation5 + $0x48] sm:$0xff]
    %v156 = vld [vmem:[#allocation5 + $0x50] sm:$0xff]
    %v157 = vld [vmem:[#allocation5 + $0x58] sm:$0xff]
    %v158 = vld [vmem:[#allocation5 + $0x60] sm:$0xff]
    %v159 = vld [vmem:[#allocation5 + $0x68] sm:$0xff]
    %v160 = vld [vmem:[#allocation5 + $0x70] sm:$0xff]
    %v161 = vld [vmem:[#allocation5 + $0x78] sm:$0xff]
    %v162 = vld [vmem:[%s2] sm:$0x1]
    %v164 = vlaneseq
    %v165 = vshrl.u32 %v164, 7
    %v166 = vsub.s32 0, %v165
    %v167 = vrot.slane %v162, %v166
    %169 = vmatprep.subr.mxu0 0.0
    %170 = vmatpush1.msra.mxu0 %v146
    %171 = vmatprep.subr.mxu0 0.0
    %172 = vmatpush1.msra.mxu0 %v147
    %173 = vmatprep.subr.mxu0 0.0
    %174 = vmatpush1.msra.mxu0 %v148
    %175 = vmatprep.subr.mxu0 0.0
    %176 = vmatpush1.msra.mxu0 %v149
    %177 = vmatprep.subr.mxu0 0.0
    %178 = vmatpush1.msra.mxu0 %v150
    %179 = vmatprep.subr.mxu0 0.0
    %180 = vmatpush1.msra.mxu0 %v151
    %181 = vmatprep.subr.mxu0 0.0
    %182 = vmatpush1.msra.mxu0 %v152
    %183 = vmatprep.subr.mxu0 0.0
    %184 = vmatpush1.msra.mxu0 %v153
    %185 = vmatprep.subr.mxu0 0.0
    %186 = vmatpush1.msra.mxu0 %v154
    %187 = vmatprep.subr.mxu0 0.0
    %188 = vmatpush1.msra.mxu0 %v155
    %189 = vmatprep.subr.mxu0 0.0
    %190 = vmatpush1.msra.mxu0 %v156
    %191 = vmatprep.subr.mxu0 0.0
    %192 = vmatpush1.msra.mxu0 %v157
    %193 = vmatprep.subr.mxu0 0.0
    %194 = vmatpush1.msra.mxu0 %v158
    %195 = vmatprep.subr.mxu0 0.0
    %196 = vmatpush1.msra.mxu0 %v159
    %197 = vmatprep.subr.mxu0 0.0
    %198 = vmatpush1.msra.mxu0 %v160
    %199 = vmatprep.subr.mxu0 0.0
    %200 = vmatpush1.msra.mxu0 %v161
    %201 = vmatprep.subr.mxu0 0.0
    %202 = vmatpush1.msra.mxu0 0.0
    %203 = vmatprep.subr.mxu0 0.0
    %204 = vmatpush1.msra.mxu0 0.0
    %205 = vmatprep.subr.mxu0 0.0
    %206 = vmatpush1.msra.mxu0 0.0
    %207 = vmatprep.subr.mxu0 0.0
    %208 = vmatpush1.msra.mxu0 0.0
    %209 = vmatprep.subr.mxu0 0.0
    %210 = vmatpush1.msra.mxu0 0.0
    %211 = vmatprep.subr.mxu0 0.0
    %212 = vmatpush1.msra.mxu0 0.0
    %213 = vmatprep.subr.mxu0 0.0
    %214 = vmatpush1.msra.mxu0 0.0
    %215 = vmatprep.subr.mxu0 0.0
    %216 = vmatpush1.msra.mxu0 0.0
    %217 = vmatprep.subr.mxu0 0.0
    %218 = vmatpush1.msra.mxu0 0.0
    %219 = vmatprep.subr.mxu0 0.0
    %220 = vmatpush1.msra.mxu0 0.0
    %221 = vmatprep.subr.mxu0 0.0
    %222 = vmatpush1.msra.mxu0 0.0
    %223 = vmatprep.subr.mxu0 0.0
    %224 = vmatpush1.msra.mxu0 0.0
    %225 = vmatprep.subr.mxu0 0.0
    %226 = vmatpush1.msra.mxu0 0.0
    %227 = vmatprep.subr.mxu0 0.0
    %228 = vmatpush1.msra.mxu0 0.0
    %229 = vmatprep.subr.mxu0 0.0
    %230 = vmatpush1.msra.mxu0 0.0
    %231 = vmatprep.subr.mxu0 0.0
    %232 = vmatpush1.msra.mxu0 0.0
    %233 = vmatprep.mubr.f32.mxu0 0.0
    %234 = vmatmul.mubr.f32.gmra.mrb[0].mxu0 %v82
    %v235 = vpop.f32.mrb[0].mxu0
    %v236 = vadd.f32 %v167, %v235
    %v237 = vpop.f32.mrb[0].mxu0
    %238 = vmatprep.mubr.f32.mxu0 0.0
    %239 = vmatmul.mubr.f32.gmra.mrb[0].mxu0 %v83
    %v240 = vpop.f32.mrb[0].mxu0
    %v241 = vadd.f32 %v167, %v240
    %v242 = vpop.f32.mrb[0].mxu0
    %243 = vmatprep.mubr.f32.mxu0 0.0
    %244 = vmatmul.mubr.f32.gmra.mrb[0].mxu0 %v84
    %v245 = vpop.f32.mrb[0].mxu0
    %v246 = vadd.f32 %v167, %v245
    %v247 = vpop.f32.mrb[0].mxu0
    %248 = vmatprep.mubr.f32.mxu0 0.0
    %249 = vmatmul.mubr.f32.gmra.mrb[0].mxu0 %v85
    %v250 = vpop.f32.mrb[0].mxu0
    %v251 = vadd.f32 %v167, %v250
    %v252 = vpop.f32.mrb[0].mxu0
    %253 = vmatprep.mubr.f32.mxu0 0.0
    %254 = vmatmul.mubr.f32.gmra.mrb[0].mxu0 %v86
    %v255 = vpop.f32.mrb[0].mxu0
    %v256 = vadd.f32 %v167, %v255
    %v257 = vpop.f32.mrb[0].mxu0
    %258 = vmatprep.mubr.f32.mxu0 0.0
    %259 = vmatmul.mubr.f32.gmra.mrb[0].mxu0 %v87
    %v260 = vpop.f32.mrb[0].mxu0
    %v261 = vadd.f32 %v167, %v260
    %v262 = vpop.f32.mrb[0].mxu0
    %263 = vmatprep.mubr.f32.mxu0 0.0
    %264 = vmatmul.mubr.f32.gmra.mrb[0].mxu0 %v88
    %v265 = vpop.f32.mrb[0].mxu0
    %v266 = vadd.f32 %v167, %v265
    %v267 = vpop.f32.mrb[0].mxu0
    %268 = vmatprep.mubr.f32.mxu0 0.0
    %269 = vmatmul.mubr.f32.gmra.mrb[0].mxu0 %v89
    %v270 = vpop.f32.mrb[0].mxu0
    %v271 = vadd.f32 %v167, %v270
    %v272 = vpop.f32.mrb[0].mxu0
    %273 = vmatprep.mubr.f32.mxu0 0.0
    %274 = vmatmul.mubr.f32.gmra.mrb[0].mxu0 %v90
    %v275 = vpop.f32.mrb[0].mxu0
    %v276 = vadd.f32 %v167, %v275
    %v277 = vpop.f32.mrb[0].mxu0
    %278 = vmatprep.mubr.f32.mxu0 0.0
    %279 = vmatmul.mubr.f32.gmra.mrb[0].mxu0 %v91
    %v280 = vpop.f32.mrb[0].mxu0
    %v281 = vadd.f32 %v167, %v280
    %v282 = vpop.f32.mrb[0].mxu0
    %283 = vmatprep.mubr.f32.mxu0 0.0
    %284 = vmatmul.mubr.f32.gmra.mrb[0].mxu0 %v92
    %v285 = vpop.f32.mrb[0].mxu0
    %v286 = vadd.f32 %v167, %v285
    %v287 = vpop.f32.mrb[0].mxu0
    %288 = vmatprep.mubr.f32.mxu0 0.0
    %289 = vmatmul.mubr.f32.gmra.mrb[0].mxu0 %v93
    %v290 = vpop.f32.mrb[0].mxu0
    %v291 = vadd.f32 %v167, %v290
    %v292 = vpop.f32.mrb[0].mxu0
    %293 = vmatprep.mubr.f32.mxu0 0.0
    %294 = vmatmul.mubr.f32.gmra.mrb[0].mxu0 %v94
    %v295 = vpop.f32.mrb[0].mxu0
    %v296 = vadd.f32 %v167, %v295
    %v297 = vpop.f32.mrb[0].mxu0
    %298 = vmatprep.mubr.f32.mxu0 0.0
    %299 = vmatmul.mubr.f32.gmra.mrb[0].mxu0 %v95
    %v300 = vpop.f32.mrb[0].mxu0
    %v301 = vadd.f32 %v167, %v300
    %v302 = vpop.f32.mrb[0].mxu0
    %303 = vmatprep.mubr.f32.mxu0 0.0
    %304 = vmatmul.mubr.f32.gmra.mrb[0].mxu0 %v96
    %v305 = vpop.f32.mrb[0].mxu0
    %v306 = vadd.f32 %v167, %v305
    %v307 = vpop.f32.mrb[0].mxu0
    %308 = vmatprep.mubr.f32.mxu0 0.0
    %309 = vmatmul.mubr.f32.gmra.mrb[0].mxu0 %v97
    %v310 = vpop.f32.mrb[0].mxu0
    %v311 = vadd.f32 %v167, %v310
    %v312 = vpop.f32.mrb[0].mxu0
    %313 = vmatprep.mubr.f32.mxu0 0.0
    %314 = vmatmul.mubr.f32.gmra.mrb[0].mxu0 %v98
    %v315 = vpop.f32.mrb[0].mxu0
    %v316 = vadd.f32 %v167, %v315
    %v317 = vpop.f32.mrb[0].mxu0
    %318 = vmatprep.mubr.f32.mxu0 0.0
    %319 = vmatmul.mubr.f32.gmra.mrb[0].mxu0 %v99
    %v320 = vpop.f32.mrb[0].mxu0
    %v321 = vadd.f32 %v167, %v320
    %v322 = vpop.f32.mrb[0].mxu0
    %323 = vmatprep.mubr.f32.mxu0 0.0
    %324 = vmatmul.mubr.f32.gmra.mrb[0].mxu0 %v100
    %v325 = vpop.f32.mrb[0].mxu0
    %v326 = vadd.f32 %v167, %v325
    %v327 = vpop.f32.mrb[0].mxu0
    %328 = vmatprep.mubr.f32.mxu0 0.0
    %329 = vmatmul.mubr.f32.gmra.mrb[0].mxu0 %v101
    %v330 = vpop.f32.mrb[0].mxu0
    %v331 = vadd.f32 %v167, %v330
    %v332 = vpop.f32.mrb[0].mxu0
    %333 = vmatprep.mubr.f32.mxu0 0.0
    %334 = vmatmul.mubr.f32.gmra.mrb[0].mxu0 %v102
    %v335 = vpop.f32.mrb[0].mxu0
    %v336 = vadd.f32 %v167, %v335
    %v337 = vpop.f32.mrb[0].mxu0
    %338 = vmatprep.mubr.f32.mxu0 0.0
    %339 = vmatmul.mubr.f32.gmra.mrb[0].mxu0 %v103
    %v340 = vpop.f32.mrb[0].mxu0
    %v341 = vadd.f32 %v167, %v340
    %v342 = vpop.f32.mrb[0].mxu0
    %343 = vmatprep.mubr.f32.mxu0 0.0
    %344 = vmatmul.mubr.f32.gmra.mrb[0].mxu0 %v104
    %v345 = vpop.f32.mrb[0].mxu0
    %v346 = vadd.f32 %v167, %v345
    %v347 = vpop.f32.mrb[0].mxu0
    %348 = vmatprep.mubr.f32.mxu0 0.0
    %349 = vmatmul.mubr.f32.gmra.mrb[0].mxu0 %v105
    %v350 = vpop.f32.mrb[0].mxu0
    %v351 = vadd.f32 %v167, %v350
    %v352 = vpop.f32.mrb[0].mxu0
    %353 = vmatprep.mubr.f32.mxu0 0.0
    %354 = vmatmul.mubr.f32.gmra.mrb[0].mxu0 %v106
    %v355 = vpop.f32.mrb[0].mxu0
    %v356 = vadd.f32 %v167, %v355
    %v357 = vpop.f32.mrb[0].mxu0
    %358 = vmatprep.mubr.f32.mxu0 0.0
    %359 = vmatmul.mubr.f32.gmra.mrb[0].mxu0 %v107
    %v360 = vpop.f32.mrb[0].mxu0
    %v361 = vadd.f32 %v167, %v360
    %v362 = vpop.f32.mrb[0].mxu0
    %363 = vmatprep.mubr.f32.mxu0 0.0
    %364 = vmatmul.mubr.f32.gmra.mrb[0].mxu0 %v108
    %v365 = vpop.f32.mrb[0].mxu0
    %v366 = vadd.f32 %v167, %v365
    %v367 = vpop.f32.mrb[0].mxu0
    %368 = vmatprep.mubr.f32.mxu0 0.0
    %369 = vmatmul.mubr.f32.gmra.mrb[0].mxu0 %v109
    %v370 = vpop.f32.mrb[0].mxu0
    %v371 = vadd.f32 %v167, %v370
    %v372 = vpop.f32.mrb[0].mxu0
    %373 = vmatprep.mubr.f32.mxu0 0.0
    %374 = vmatmul.mubr.f32.gmra.mrb[0].mxu0 %v110
    %v375 = vpop.f32.mrb[0].mxu0
    %v376 = vadd.f32 %v167, %v375
    %v377 = vpop.f32.mrb[0].mxu0
    %378 = vmatprep.mubr.f32.mxu0 0.0
    %379 = vmatmul.mubr.f32.gmra.mrb[0].mxu0 %v111
    %v380 = vpop.f32.mrb[0].mxu0
    %v381 = vadd.f32 %v167, %v380
    %v382 = vpop.f32.mrb[0].mxu0
    %383 = vmatprep.mubr.f32.mxu0 0.0
    %384 = vmatmul.mubr.f32.gmra.mrb[0].mxu0 %v112
    %v385 = vpop.f32.mrb[0].mxu0
    %v386 = vadd.f32 %v167, %v385
    %v387 = vpop.f32.mrb[0].mxu0
    %388 = vmatprep.mubr.f32.mxu0 0.0
    %389 = vmatmul.mubr.f32.gmra.mrb[0].mxu0 %v113
    %v390 = vpop.f32.mrb[0].mxu0
    %v391 = vadd.f32 %v167, %v390
    %v392 = vpop.f32.mrb[0].mxu0
    %393 = vmatprep.mubr.f32.mxu0 0.0
    %394 = vmatmul.mubr.f32.gmra.mrb[0].mxu0 %v114
    %v395 = vpop.f32.mrb[0].mxu0
    %v396 = vadd.f32 %v167, %v395
    %v397 = vpop.f32.mrb[0].mxu0
    %398 = vmatprep.mubr.f32.mxu0 0.0
    %399 = vmatmul.mubr.f32.gmra.mrb[0].mxu0 %v115
    %v400 = vpop.f32.mrb[0].mxu0
    %v401 = vadd.f32 %v167, %v400
    %v402 = vpop.f32.mrb[0].mxu0
    %403 = vmatprep.mubr.f32.mxu0 0.0
    %404 = vmatmul.mubr.f32.gmra.mrb[0].mxu0 %v116
    %v405 = vpop.f32.mrb[0].mxu0
    %v406 = vadd.f32 %v167, %v405
    %v407 = vpop.f32.mrb[0].mxu0
    %408 = vmatprep.mubr.f32.mxu0 0.0
    %409 = vmatmul.mubr.f32.gmra.mrb[0].mxu0 %v117
    %v410 = vpop.f32.mrb[0].mxu0
    %v411 = vadd.f32 %v167, %v410
    %v412 = vpop.f32.mrb[0].mxu0
    %413 = vmatprep.mubr.f32.mxu0 0.0
    %414 = vmatmul.mubr.f32.gmra.mrb[0].mxu0 %v118
    %v415 = vpop.f32.mrb[0].mxu0
    %v416 = vadd.f32 %v167, %v415
    %v417 = vpop.f32.mrb[0].mxu0
    %418 = vmatprep.mubr.f32.mxu0 0.0
    %419 = vmatmul.mubr.f32.gmra.mrb[0].mxu0 %v119
    %v420 = vpop.f32.mrb[0].mxu0
    %v421 = vadd.f32 %v167, %v420
    %v422 = vpop.f32.mrb[0].mxu0
    %423 = vmatprep.mubr.f32.mxu0 0.0
    %424 = vmatmul.mubr.f32.gmra.mrb[0].mxu0 %v120
    %v425 = vpop.f32.mrb[0].mxu0
    %v426 = vadd.f32 %v167, %v425
    %v427 = vpop.f32.mrb[0].mxu0
    %428 = vmatprep.mubr.f32.mxu0 0.0
    %429 = vmatmul.mubr.f32.gmra.mrb[0].mxu0 %v121
    %v430 = vpop.f32.mrb[0].mxu0
    %v431 = vadd.f32 %v167, %v430
    %v432 = vpop.f32.mrb[0].mxu0
    %433 = vmatprep.mubr.f32.mxu0 0.0
    %434 = vmatmul.mubr.f32.gmra.mrb[0].mxu0 %v122
    %v435 = vpop.f32.mrb[0].mxu0
    %v436 = vadd.f32 %v167, %v435
    %v437 = vpop.f32.mrb[0].mxu0
    %438 = vmatprep.mubr.f32.mxu0 0.0
    %439 = vmatmul.mubr.f32.gmra.mrb[0].mxu0 %v123
    %v440 = vpop.f32.mrb[0].mxu0
    %v441 = vadd.f32 %v167, %v440
    %v442 = vpop.f32.mrb[0].mxu0
    %443 = vmatprep.mubr.f32.mxu0 0.0
    %444 = vmatmul.mubr.f32.gmra.mrb[0].mxu0 %v124
    %v445 = vpop.f32.mrb[0].mxu0
    %v446 = vadd.f32 %v167, %v445
    %v447 = vpop.f32.mrb[0].mxu0
    %448 = vmatprep.mubr.f32.mxu0 0.0
    %449 = vmatmul.mubr.f32.gmra.mrb[0].mxu0 %v125
    %v450 = vpop.f32.mrb[0].mxu0
    %v451 = vadd.f32 %v167, %v450
    %v452 = vpop.f32.mrb[0].mxu0
    %453 = vmatprep.mubr.f32.mxu0 0.0
    %454 = vmatmul.mubr.f32.gmra.mrb[0].mxu0 %v126
    %v455 = vpop.f32.mrb[0].mxu0
    %v456 = vadd.f32 %v167, %v455
    %v457 = vpop.f32.mrb[0].mxu0
    %458 = vmatprep.mubr.f32.mxu0 0.0
    %459 = vmatmul.mubr.f32.gmra.mrb[0].mxu0 %v127
    %v460 = vpop.f32.mrb[0].mxu0
    %v461 = vadd.f32 %v167, %v460
    %v462 = vpop.f32.mrb[0].mxu0
    %463 = vmatprep.mubr.f32.mxu0 0.0
    %464 = vmatmul.mubr.f32.gmra.mrb[0].mxu0 %v128
    %v465 = vpop.f32.mrb[0].mxu0
    %v466 = vadd.f32 %v167, %v465
    %v467 = vpop.f32.mrb[0].mxu0
    %468 = vmatprep.mubr.f32.mxu0 0.0
    %469 = vmatmul.mubr.f32.gmra.mrb[0].mxu0 %v129
    %v470 = vpop.f32.mrb[0].mxu0
    %v471 = vadd.f32 %v167, %v470
    %v472 = vpop.f32.mrb[0].mxu0
    %473 = vmatprep.mubr.f32.mxu0 0.0
    %474 = vmatmul.mubr.f32.gmra.mrb[0].mxu0 %v130
    %v475 = vpop.f32.mrb[0].mxu0
    %v476 = vadd.f32 %v167, %v475
    %v477 = vpop.f32.mrb[0].mxu0
    %478 = vmatprep.mubr.f32.mxu0 0.0
    %479 = vmatmul.mubr.f32.gmra.mrb[0].mxu0 %v131
    %v480 = vpop.f32.mrb[0].mxu0
    %v481 = vadd.f32 %v167, %v480
    %v482 = vpop.f32.mrb[0].mxu0
    %483 = vmatprep.mubr.f32.mxu0 0.0
    %484 = vmatmul.mubr.f32.gmra.mrb[0].mxu0 %v132
    %v485 = vpop.f32.mrb[0].mxu0
    %v486 = vadd.f32 %v167, %v485
    %v487 = vpop.f32.mrb[0].mxu0
    %488 = vmatprep.mubr.f32.mxu0 0.0
    %489 = vmatmul.mubr.f32.gmra.mrb[0].mxu0 %v133
    %v490 = vpop.f32.mrb[0].mxu0
    %v491 = vadd.f32 %v167, %v490
    %v492 = vpop.f32.mrb[0].mxu0
    %493 = vmatprep.mubr.f32.mxu0 0.0
    %494 = vmatmul.mubr.f32.gmra.mrb[0].mxu0 %v134
    %v495 = vpop.f32.mrb[0].mxu0
    %v496 = vadd.f32 %v167, %v495
    %v497 = vpop.f32.mrb[0].mxu0
    %498 = vmatprep.mubr.f32.mxu0 0.0
    %499 = vmatmul.mubr.f32.gmra.mrb[0].mxu0 %v135
    %v500 = vpop.f32.mrb[0].mxu0
    %v501 = vadd.f32 %v167, %v500
    %v502 = vpop.f32.mrb[0].mxu0
    %503 = vmatprep.mubr.f32.mxu0 0.0
    %504 = vmatmul.mubr.f32.gmra.mrb[0].mxu0 %v136
    %v505 = vpop.f32.mrb[0].mxu0
    %v506 = vadd.f32 %v167, %v505
    %v507 = vpop.f32.mrb[0].mxu0
    %508 = vmatprep.mubr.f32.mxu0 0.0
    %509 = vmatmul.mubr.f32.gmra.mrb[0].mxu0 %v137
    %v510 = vpop.f32.mrb[0].mxu0
    %v511 = vadd.f32 %v167, %v510
    %v512 = vpop.f32.mrb[0].mxu0
    %513 = vmatprep.mubr.f32.mxu0 0.0
    %514 = vmatmul.mubr.f32.gmra.mrb[0].mxu0 %v138
    %v515 = vpop.f32.mrb[0].mxu0
    %v516 = vadd.f32 %v167, %v515
    %v517 = vpop.f32.mrb[0].mxu0
    %518 = vmatprep.mubr.f32.mxu0 0.0
    %519 = vmatmul.mubr.f32.gmra.mrb[0].mxu0 %v139
    %v520 = vpop.f32.mrb[0].mxu0
    %v521 = vadd.f32 %v167, %v520
    %v522 = vpop.f32.mrb[0].mxu0
    %523 = vmatprep.mubr.f32.mxu0 0.0
    %524 = vmatmul.mubr.f32.gmra.mrb[0].mxu0 %v140
    %v525 = vpop.f32.mrb[0].mxu0
    %v526 = vadd.f32 %v167, %v525
    %v527 = vpop.f32.mrb[0].mxu0
    %528 = vmatprep.mubr.f32.mxu0 0.0
    %529 = vmatmul.mubr.f32.gmra.mrb[0].mxu0 %v141
    %v530 = vpop.f32.mrb[0].mxu0
    %v531 = vadd.f32 %v167, %v530
    %v532 = vpop.f32.mrb[0].mxu0
    %533 = vmatprep.mubr.f32.mxu0 0.0
    %534 = vmatmul.mubr.f32.gmra.mrb[0].mxu0 %v142
    %v535 = vpop.f32.mrb[0].mxu0
    %v536 = vadd.f32 %v167, %v535
    %v537 = vpop.f32.mrb[0].mxu0
    %538 = vmatprep.mubr.f32.mxu0 0.0
    %539 = vmatmul.mubr.f32.gmra.mrb[0].mxu0 %v143
    %v540 = vpop.f32.mrb[0].mxu0
    %v541 = vadd.f32 %v167, %v540
    %v542 = vpop.f32.mrb[0].mxu0
    %543 = vmatprep.mubr.f32.mxu0 0.0
    %544 = vmatmul.mubr.f32.gmra.mrb[0].mxu0 %v144
    %v545 = vpop.f32.mrb[0].mxu0
    %v546 = vadd.f32 %v167, %v545
    %v547 = vpop.f32.mrb[0].mxu0
    %548 = vmatprep.mubr.f32.mxu0 0.0
    %549 = vmatmul.mubr.f32.gmra.mrb[0].mxu0 %v145
    %v550 = vpop.f32.mrb[0].mxu0
    %v551 = vadd.f32 %v167, %v550
    %v552 = vpop.f32.mrb[0].mxu0
    %553 = vdwg.mxu0
    %v554 = vmax.f32 %v236, 0.0
    %v555 = vmax.f32 %v241, 0.0
    %v556 = vmax.f32 %v246, 0.0
    %v557 = vmax.f32 %v251, 0.0
    %v558 = vmax.f32 %v256, 0.0
    %v559 = vmax.f32 %v261, 0.0
    %v560 = vmax.f32 %v266, 0.0
    %v561 = vmax.f32 %v271, 0.0
    %v562 = vmax.f32 %v276, 0.0
    %v563 = vmax.f32 %v281, 0.0
    %v564 = vmax.f32 %v286, 0.0
    %v565 = vmax.f32 %v291, 0.0
    %v566 = vmax.f32 %v296, 0.0
    %v567 = vmax.f32 %v301, 0.0
    %v568 = vmax.f32 %v306, 0.0
    %v569 = vmax.f32 %v311, 0.0
    %v570 = vmax.f32 %v316, 0.0
    %v571 = vmax.f32 %v321, 0.0
    %v572 = vmax.f32 %v326, 0.0
    %v573 = vmax.f32 %v331, 0.0
    %v574 = vmax.f32 %v336, 0.0
    %v575 = vmax.f32 %v341, 0.0
    %v576 = vmax.f32 %v346, 0.0
    %v577 = vmax.f32 %v351, 0.0
    %v578 = vmax.f32 %v356, 0.0
    %v579 = vmax.f32 %v361, 0.0
    %v580 = vmax.f32 %v366, 0.0
    %v581 = vmax.f32 %v371, 0.0
    %v582 = vmax.f32 %v376, 0.0
    %v583 = vmax.f32 %v381, 0.0
    %v584 = vmax.f32 %v386, 0.0
    %v585 = vmax.f32 %v391, 0.0
    %v586 = vmax.f32 %v396, 0.0
    %v587 = vmax.f32 %v401, 0.0
    %v588 = vmax.f32 %v406, 0.0
    %v589 = vmax.f32 %v411, 0.0
    %v590 = vmax.f32 %v416, 0.0
    %v591 = vmax.f32 %v421, 0.0
    %v592 = vmax.f32 %v426, 0.0
    %v593 = vmax.f32 %v431, 0.0
    %v594 = vmax.f32 %v436, 0.0
    %v595 = vmax.f32 %v441, 0.0
    %v596 = vmax.f32 %v446, 0.0
    %v597 = vmax.f32 %v451, 0.0
    %v598 = vmax.f32 %v456, 0.0
    %v599 = vmax.f32 %v461, 0.0
    %v600 = vmax.f32 %v466, 0.0
    %v601 = vmax.f32 %v471, 0.0
    %v602 = vmax.f32 %v476, 0.0
    %v603 = vmax.f32 %v481, 0.0
    %v604 = vmax.f32 %v486, 0.0
    %v605 = vmax.f32 %v491, 0.0
    %v606 = vmax.f32 %v496, 0.0
    %v607 = vmax.f32 %v501, 0.0
    %v608 = vmax.f32 %v506, 0.0
    %v609 = vmax.f32 %v511, 0.0
    %v610 = vmax.f32 %v516, 0.0
    %v611 = vmax.f32 %v521, 0.0
    %v612 = vmax.f32 %v526, 0.0
    %v613 = vmax.f32 %v531, 0.0
    %v614 = vmax.f32 %v536, 0.0
    %v615 = vmax.f32 %v541, 0.0
    %v616 = vmax.f32 %v546, 0.0
    %v617 = vmax.f32 %v551, 0.0
    %v618 = vld [vmem:[#allocation7] sm:$0xff]
    %v619 = vld [vmem:[#allocation7 + $0x8] sm:$0xff]
    %v620 = vld [vmem:[#allocation7 + $0x10] sm:$0xff]
    %v621 = vld [vmem:[#allocation7 + $0x18] sm:$0xff]
    %v622 = vld [vmem:[#allocation7 + $0x20] sm:$0xff]
    %v623 = vld [vmem:[#allocation7 + $0x28] sm:$0xff]
    %v624 = vld [vmem:[#allocation7 + $0x30] sm:$0xff]
    %v625 = vld [vmem:[#allocation7 + $0x38] sm:$0xff]
    %v626 = vld [vmem:[#allocation7 + $0x40] sm:$0xff]
    %v627 = vld [vmem:[#allocation7 + $0x48] sm:$0xff]
    %v628 = vld [vmem:[#allocation7 + $0x50] sm:$0xff]
    %v629 = vld [vmem:[#allocation7 + $0x58] sm:$0xff]
    %v630 = vld [vmem:[#allocation7 + $0x60] sm:$0xff]
    %v631 = vld [vmem:[#allocation7 + $0x68] sm:$0xff]
    %v632 = vld [vmem:[#allocation7 + $0x70] sm:$0xff]
    %v633 = vld [vmem:[#allocation7 + $0x78] sm:$0xff]
    %v634 = vld [vmem:[%s4] sm:$0x1]
    %v636 = vlaneseq
    %v637 = vshrl.u32 %v636, 7
    %v638 = vsub.s32 0, %v637
    %v639 = vrot.slane %v634, %v638
    %641 = vmatprep.subr.mxu0 0.0
    %642 = vmatpush1.msra.mxu0 %v618
    %643 = vmatprep.subr.mxu0 0.0
    %644 = vmatpush1.msra.mxu0 %v619
    %645 = vmatprep.subr.mxu0 0.0
    %646 = vmatpush1.msra.mxu0 %v620
    %647 = vmatprep.subr.mxu0 0.0
    %648 = vmatpush1.msra.mxu0 %v621
    %649 = vmatprep.subr.mxu0 0.0
    %650 = vmatpush1.msra.mxu0 %v622
    %651 = vmatprep.subr.mxu0 0.0
    %652 = vmatpush1.msra.mxu0 %v623
    %653 = vmatprep.subr.mxu0 0.0
    %654 = vmatpush1.msra.mxu0 %v624
    %655 = vmatprep.subr.mxu0 0.0
    %656 = vmatpush1.msra.mxu0 %v625
    %657 = vmatprep.subr.mxu0 0.0
    %658 = vmatpush1.msra.mxu0 %v626
    %659 = vmatprep.subr.mxu0 0.0
    %660 = vmatpush1.msra.mxu0 %v627
    %661 = vmatprep.subr.mxu0 0.0
    %662 = vmatpush1.msra.mxu0 %v628
    %663 = vmatprep.subr.mxu0 0.0
    %664 = vmatpush1.msra.mxu0 %v629
    %665 = vmatprep.subr.mxu0 0.0
    %666 = vmatpush1.msra.mxu0 %v630
    %667 = vmatprep.subr.mxu0 0.0
    %668 = vmatpush1.msra.mxu0 %v631
    %669 = vmatprep.subr.mxu0 0.0
    %670 = vmatpush1.msra.mxu0 %v632
    %671 = vmatprep.subr.mxu0 0.0
    %672 = vmatpush1.msra.mxu0 %v633
    %673 = vmatprep.subr.mxu0 0.0
    %674 = vmatpush1.msra.mxu0 0.0
    %675 = vmatprep.subr.mxu0 0.0
    %676 = vmatpush1.msra.mxu0 0.0
    %677 = vmatprep.subr.mxu0 0.0
    %678 = vmatpush1.msra.mxu0 0.0
    %679 = vmatprep.subr.mxu0 0.0
    %680 = vmatpush1.msra.mxu0 0.0
    %681 = vmatprep.subr.mxu0 0.0
    %682 = vmatpush1.msra.mxu0 0.0
    %683 = vmatprep.subr.mxu0 0.0
    %684 = vmatpush1.msra.mxu0 0.0
    %685 = vmatprep.subr.mxu0 0.0
    %686 = vmatpush1.msra.mxu0 0.0
    %687 = vmatprep.subr.mxu0 0.0
    %688 = vmatpush1.msra.mxu0 0.0
    %689 = vmatprep.subr.mxu0 0.0
    %690 = vmatpush1.msra.mxu0 0.0
    %691 = vmatprep.subr.mxu0 0.0
    %692 = vmatpush1.msra.mxu0 0.0
    %693 = vmatprep.subr.mxu0 0.0
    %694 = vmatpush1.msra.mxu0 0.0
    %695 = vmatprep.subr.mxu0 0.0
    %696 = vmatpush1.msra.mxu0 0.0
    %697 = vmatprep.subr.mxu0 0.0
    %698 = vmatpush1.msra.mxu0 0.0
    %699 = vmatprep.subr.mxu0 0.0
    %700 = vmatpush1.msra.mxu0 0.0
    %701 = vmatprep.subr.mxu0 0.0
    %702 = vmatpush1.msra.mxu0 0.0
    %703 = vmatprep.subr.mxu0 0.0
    %704 = vmatpush1.msra.mxu0 0.0
    %705 = vmatprep.mubr.f32.mxu0 0.0
    %706 = vmatmul.mubr.f32.gmra.mrb[0].mxu0 %v554
    %v707 = vpop.f32.mrb[0].mxu0
    %v708 = vadd.f32 %v639, %v707
    %v709 = vpop.f32.mrb[0].mxu0
    %710 = vmatprep.mubr.f32.mxu0 0.0
    %711 = vmatmul.mubr.f32.gmra.mrb[0].mxu0 %v555
    %v712 = vpop.f32.mrb[0].mxu0
    %v713 = vadd.f32 %v639, %v712
    %v714 = vpop.f32.mrb[0].mxu0
    %715 = vmatprep.mubr.f32.mxu0 0.0
    %716 = vmatmul.mubr.f32.gmra.mrb[0].mxu0 %v556
    %v717 = vpop.f32.mrb[0].mxu0
    %v718 = vadd.f32 %v639, %v717
    %v719 = vpop.f32.mrb[0].mxu0
    %720 = vmatprep.mubr.f32.mxu0 0.0
    %721 = vmatmul.mubr.f32.gmra.mrb[0].mxu0 %v557
    %v722 = vpop.f32.mrb[0].mxu0
    %v723 = vadd.f32 %v639, %v722
    %v724 = vpop.f32.mrb[0].mxu0
    %725 = vmatprep.mubr.f32.mxu0 0.0
    %726 = vmatmul.mubr.f32.gmra.mrb[0].mxu0 %v558
    %v727 = vpop.f32.mrb[0].mxu0
    %v728 = vadd.f32 %v639, %v727
    %v729 = vpop.f32.mrb[0].mxu0
    %730 = vmatprep.mubr.f32.mxu0 0.0
    %731 = vmatmul.mubr.f32.gmra.mrb[0].mxu0 %v559
    %v732 = vpop.f32.mrb[0].mxu0
    %v733 = vadd.f32 %v639, %v732
    %v734 = vpop.f32.mrb[0].mxu0
    %735 = vmatprep.mubr.f32.mxu0 0.0
    %736 = vmatmul.mubr.f32.gmra.mrb[0].mxu0 %v560
    %v737 = vpop.f32.mrb[0].mxu0
    %v738 = vadd.f32 %v639, %v737
    %v739 = vpop.f32.mrb[0].mxu0
    %740 = vmatprep.mubr.f32.mxu0 0.0
    %741 = vmatmul.mubr.f32.gmra.mrb[0].mxu0 %v561
    %v742 = vpop.f32.mrb[0].mxu0
    %v743 = vadd.f32 %v639, %v742
    %v744 = vpop.f32.mrb[0].mxu0
    %745 = vmatprep.mubr.f32.mxu0 0.0
    %746 = vmatmul.mubr.f32.gmra.mrb[0].mxu0 %v562
    %v747 = vpop.f32.mrb[0].mxu0
    %v748 = vadd.f32 %v639, %v747
    %v749 = vpop.f32.mrb[0].mxu0
    %750 = vmatprep.mubr.f32.mxu0 0.0
    %751 = vmatmul.mubr.f32.gmra.mrb[0].mxu0 %v563
    %v752 = vpop.f32.mrb[0].mxu0
    %v753 = vadd.f32 %v639, %v752
    %v754 = vpop.f32.mrb[0].mxu0
    %755 = vmatprep.mubr.f32.mxu0 0.0
    %756 = vmatmul.mubr.f32.gmra.mrb[0].mxu0 %v564
    %v757 = vpop.f32.mrb[0].mxu0
    %v758 = vadd.f32 %v639, %v757
    %v759 = vpop.f32.mrb[0].mxu0
    %760 = vmatprep.mubr.f32.mxu0 0.0
    %761 = vmatmul.mubr.f32.gmra.mrb[0].mxu0 %v565
    %v762 = vpop.f32.mrb[0].mxu0
    %v763 = vadd.f32 %v639, %v762
    %v764 = vpop.f32.mrb[0].mxu0
    %765 = vmatprep.mubr.f32.mxu0 0.0
    %766 = vmatmul.mubr.f32.gmra.mrb[0].mxu0 %v566
    %v767 = vpop.f32.mrb[0].mxu0
    %v768 = vadd.f32 %v639, %v767
    %v769 = vpop.f32.mrb[0].mxu0
    %770 = vmatprep.mubr.f32.mxu0 0.0
    %771 = vmatmul.mubr.f32.gmra.mrb[0].mxu0 %v567
    %v772 = vpop.f32.mrb[0].mxu0
    %v773 = vadd.f32 %v639, %v772
    %v774 = vpop.f32.mrb[0].mxu0
    %775 = vmatprep.mubr.f32.mxu0 0.0
    %776 = vmatmul.mubr.f32.gmra.mrb[0].mxu0 %v568
    %v777 = vpop.f32.mrb[0].mxu0
    %v778 = vadd.f32 %v639, %v777
    %v779 = vpop.f32.mrb[0].mxu0
    %780 = vmatprep.mubr.f32.mxu0 0.0
    %781 = vmatmul.mubr.f32.gmra.mrb[0].mxu0 %v569
    %v782 = vpop.f32.mrb[0].mxu0
    %v783 = vadd.f32 %v639, %v782
    %v784 = vpop.f32.mrb[0].mxu0
    %785 = vmatprep.mubr.f32.mxu0 0.0
    %786 = vmatmul.mubr.f32.gmra.mrb[0].mxu0 %v570
    %v787 = vpop.f32.mrb[0].mxu0
    %v788 = vadd.f32 %v639, %v787
    %v789 = vpop.f32.mrb[0].mxu0
    %790 = vmatprep.mubr.f32.mxu0 0.0
    %791 = vmatmul.mubr.f32.gmra.mrb[0].mxu0 %v571
    %v792 = vpop.f32.mrb[0].mxu0
    %v793 = vadd.f32 %v639, %v792
    %v794 = vpop.f32.mrb[0].mxu0
    %795 = vmatprep.mubr.f32.mxu0 0.0
    %796 = vmatmul.mubr.f32.gmra.mrb[0].mxu0 %v572
    %v797 = vpop.f32.mrb[0].mxu0
    %v798 = vadd.f32 %v639, %v797
    %v799 = vpop.f32.mrb[0].mxu0
    %800 = vmatprep.mubr.f32.mxu0 0.0
    %801 = vmatmul.mubr.f32.gmra.mrb[0].mxu0 %v573
    %v802 = vpop.f32.mrb[0].mxu0
    %v803 = vadd.f32 %v639, %v802
    %v804 = vpop.f32.mrb[0].mxu0
    %805 = vmatprep.mubr.f32.mxu0 0.0
    %806 = vmatmul.mubr.f32.gmra.mrb[0].mxu0 %v574
    %v807 = vpop.f32.mrb[0].mxu0
    %v808 = vadd.f32 %v639, %v807
    %v809 = vpop.f32.mrb[0].mxu0
    %810 = vmatprep.mubr.f32.mxu0 0.0
    %811 = vmatmul.mubr.f32.gmra.mrb[0].mxu0 %v575
    %v812 = vpop.f32.mrb[0].mxu0
    %v813 = vadd.f32 %v639, %v812
    %v814 = vpop.f32.mrb[0].mxu0
    %815 = vmatprep.mubr.f32.mxu0 0.0
    %816 = vmatmul.mubr.f32.gmra.mrb[0].mxu0 %v576
    %v817 = vpop.f32.mrb[0].mxu0
    %v818 = vadd.f32 %v639, %v817
    %v819 = vpop.f32.mrb[0].mxu0
    %820 = vmatprep.mubr.f32.mxu0 0.0
    %821 = vmatmul.mubr.f32.gmra.mrb[0].mxu0 %v577
    %v822 = vpop.f32.mrb[0].mxu0
    %v823 = vadd.f32 %v639, %v822
    %v824 = vpop.f32.mrb[0].mxu0
    %825 = vmatprep.mubr.f32.mxu0 0.0
    %826 = vmatmul.mubr.f32.gmra.mrb[0].mxu0 %v578
    %v827 = vpop.f32.mrb[0].mxu0
    %v828 = vadd.f32 %v639, %v827
    %v829 = vpop.f32.mrb[0].mxu0
    %830 = vmatprep.mubr.f32.mxu0 0.0
    %831 = vmatmul.mubr.f32.gmra.mrb[0].mxu0 %v579
    %v832 = vpop.f32.mrb[0].mxu0
    %v833 = vadd.f32 %v639, %v832
    %v834 = vpop.f32.mrb[0].mxu0
    %835 = vmatprep.mubr.f32.mxu0 0.0
    %836 = vmatmul.mubr.f32.gmra.mrb[0].mxu0 %v580
    %v837 = vpop.f32.mrb[0].mxu0
    %v838 = vadd.f32 %v639, %v837
    %v839 = vpop.f32.mrb[0].mxu0
    %840 = vmatprep.mubr.f32.mxu0 0.0
    %841 = vmatmul.mubr.f32.gmra.mrb[0].mxu0 %v581
    %v842 = vpop.f32.mrb[0].mxu0
    %v843 = vadd.f32 %v639, %v842
    %v844 = vpop.f32.mrb[0].mxu0
    %845 = vmatprep.mubr.f32.mxu0 0.0
    %846 = vmatmul.mubr.f32.gmra.mrb[0].mxu0 %v582
    %v847 = vpop.f32.mrb[0].mxu0
    %v848 = vadd.f32 %v639, %v847
    %v849 = vpop.f32.mrb[0].mxu0
    %850 = vmatprep.mubr.f32.mxu0 0.0
    %851 = vmatmul.mubr.f32.gmra.mrb[0].mxu0 %v583
    %v852 = vpop.f32.mrb[0].mxu0
    %v853 = vadd.f32 %v639, %v852
    %v854 = vpop.f32.mrb[0].mxu0
    %855 = vmatprep.mubr.f32.mxu0 0.0
    %856 = vmatmul.mubr.f32.gmra.mrb[0].mxu0 %v584
    %v857 = vpop.f32.mrb[0].mxu0
    %v858 = vadd.f32 %v639, %v857
    %v859 = vpop.f32.mrb[0].mxu0
    %860 = vmatprep.mubr.f32.mxu0 0.0
    %861 = vmatmul.mubr.f32.gmra.mrb[0].mxu0 %v585
    %v862 = vpop.f32.mrb[0].mxu0
    %v863 = vadd.f32 %v639, %v862
    %v864 = vpop.f32.mrb[0].mxu0
    %865 = vmatprep.mubr.f32.mxu0 0.0
    %866 = vmatmul.mubr.f32.gmra.mrb[0].mxu0 %v586
    %v867 = vpop.f32.mrb[0].mxu0
    %v868 = vadd.f32 %v639, %v867
    %v869 = vpop.f32.mrb[0].mxu0
    %870 = vmatprep.mubr.f32.mxu0 0.0
    %871 = vmatmul.mubr.f32.gmra.mrb[0].mxu0 %v587
    %v872 = vpop.f32.mrb[0].mxu0
    %v873 = vadd.f32 %v639, %v872
    %v874 = vpop.f32.mrb[0].mxu0
    %875 = vmatprep.mubr.f32.mxu0 0.0
    %876 = vmatmul.mubr.f32.gmra.mrb[0].mxu0 %v588
    %v877 = vpop.f32.mrb[0].mxu0
    %v878 = vadd.f32 %v639, %v877
    %v879 = vpop.f32.mrb[0].mxu0
    %880 = vmatprep.mubr.f32.mxu0 0.0
    %881 = vmatmul.mubr.f32.gmra.mrb[0].mxu0 %v589
    %v882 = vpop.f32.mrb[0].mxu0
    %v883 = vadd.f32 %v639, %v882
    %v884 = vpop.f32.mrb[0].mxu0
    %885 = vmatprep.mubr.f32.mxu0 0.0
    %886 = vmatmul.mubr.f32.gmra.mrb[0].mxu0 %v590
    %v887 = vpop.f32.mrb[0].mxu0
    %v888 = vadd.f32 %v639, %v887
    %v889 = vpop.f32.mrb[0].mxu0
    %890 = vmatprep.mubr.f32.mxu0 0.0
    %891 = vmatmul.mubr.f32.gmra.mrb[0].mxu0 %v591
    %v892 = vpop.f32.mrb[0].mxu0
    %v893 = vadd.f32 %v639, %v892
    %v894 = vpop.f32.mrb[0].mxu0
    %895 = vmatprep.mubr.f32.mxu0 0.0
    %896 = vmatmul.mubr.f32.gmra.mrb[0].mxu0 %v592
    %v897 = vpop.f32.mrb[0].mxu0
    %v898 = vadd.f32 %v639, %v897
    %v899 = vpop.f32.mrb[0].mxu0
    %900 = vmatprep.mubr.f32.mxu0 0.0
    %901 = vmatmul.mubr.f32.gmra.mrb[0].mxu0 %v593
    %v902 = vpop.f32.mrb[0].mxu0
    %v903 = vadd.f32 %v639, %v902
    %v904 = vpop.f32.mrb[0].mxu0
    %905 = vmatprep.mubr.f32.mxu0 0.0
    %906 = vmatmul.mubr.f32.gmra.mrb[0].mxu0 %v594
    %v907 = vpop.f32.mrb[0].mxu0
    %v908 = vadd.f32 %v639, %v907
    %v909 = vpop.f32.mrb[0].mxu0
    %910 = vmatprep.mubr.f32.mxu0 0.0
    %911 = vmatmul.mubr.f32.gmra.mrb[0].mxu0 %v595
    %v912 = vpop.f32.mrb[0].mxu0
    %v913 = vadd.f32 %v639, %v912
    %v914 = vpop.f32.mrb[0].mxu0
    %915 = vmatprep.mubr.f32.mxu0 0.0
    %916 = vmatmul.mubr.f32.gmra.mrb[0].mxu0 %v596
    %v917 = vpop.f32.mrb[0].mxu0
    %v918 = vadd.f32 %v639, %v917
    %v919 = vpop.f32.mrb[0].mxu0
    %920 = vmatprep.mubr.f32.mxu0 0.0
    %921 = vmatmul.mubr.f32.gmra.mrb[0].mxu0 %v597
    %v922 = vpop.f32.mrb[0].mxu0
    %v923 = vadd.f32 %v639, %v922
    %v924 = vpop.f32.mrb[0].mxu0
    %925 = vmatprep.mubr.f32.mxu0 0.0
    %926 = vmatmul.mubr.f32.gmra.mrb[0].mxu0 %v598
    %v927 = vpop.f32.mrb[0].mxu0
    %v928 = vadd.f32 %v639, %v927
    %v929 = vpop.f32.mrb[0].mxu0
    %930 = vmatprep.mubr.f32.mxu0 0.0
    %931 = vmatmul.mubr.f32.gmra.mrb[0].mxu0 %v599
    %v932 = vpop.f32.mrb[0].mxu0
    %v933 = vadd.f32 %v639, %v932
    %v934 = vpop.f32.mrb[0].mxu0
    %935 = vmatprep.mubr.f32.mxu0 0.0
    %936 = vmatmul.mubr.f32.gmra.mrb[0].mxu0 %v600
    %v937 = vpop.f32.mrb[0].mxu0
    %v938 = vadd.f32 %v639, %v937
    %v939 = vpop.f32.mrb[0].mxu0
    %940 = vmatprep.mubr.f32.mxu0 0.0
    %941 = vmatmul.mubr.f32.gmra.mrb[0].mxu0 %v601
    %v942 = vpop.f32.mrb[0].mxu0
    %v943 = vadd.f32 %v639, %v942
    %v944 = vpop.f32.mrb[0].mxu0
    %945 = vmatprep.mubr.f32.mxu0 0.0
    %946 = vmatmul.mubr.f32.gmra.mrb[0].mxu0 %v602
    %v947 = vpop.f32.mrb[0].mxu0
    %v948 = vadd.f32 %v639, %v947
    %v949 = vpop.f32.mrb[0].mxu0
    %950 = vmatprep.mubr.f32.mxu0 0.0
    %951 = vmatmul.mubr.f32.gmra.mrb[0].mxu0 %v603
    %v952 = vpop.f32.mrb[0].mxu0
    %v953 = vadd.f32 %v639, %v952
    %v954 = vpop.f32.mrb[0].mxu0
    %955 = vmatprep.mubr.f32.mxu0 0.0
    %956 = vmatmul.mubr.f32.gmra.mrb[0].mxu0 %v604
    %v957 = vpop.f32.mrb[0].mxu0
    %v958 = vadd.f32 %v639, %v957
    %v959 = vpop.f32.mrb[0].mxu0
    %960 = vmatprep.mubr.f32.mxu0 0.0
    %961 = vmatmul.mubr.f32.gmra.mrb[0].mxu0 %v605
    %v962 = vpop.f32.mrb[0].mxu0
    %v963 = vadd.f32 %v639, %v962
    %v964 = vpop.f32.mrb[0].mxu0
    %965 = vmatprep.mubr.f32.mxu0 0.0
    %966 = vmatmul.mubr.f32.gmra.mrb[0].mxu0 %v606
    %v967 = vpop.f32.mrb[0].mxu0
    %v968 = vadd.f32 %v639, %v967
    %v969 = vpop.f32.mrb[0].mxu0
    %970 = vmatprep.mubr.f32.mxu0 0.0
    %971 = vmatmul.mubr.f32.gmra.mrb[0].mxu0 %v607
    %v972 = vpop.f32.mrb[0].mxu0
    %v973 = vadd.f32 %v639, %v972
    %v974 = vpop.f32.mrb[0].mxu0
    %975 = vmatprep.mubr.f32.mxu0 0.0
    %976 = vmatmul.mubr.f32.gmra.mrb[0].mxu0 %v608
    %v977 = vpop.f32.mrb[0].mxu0
    %v978 = vadd.f32 %v639, %v977
    %v979 = vpop.f32.mrb[0].mxu0
    %980 = vmatprep.mubr.f32.mxu0 0.0
    %981 = vmatmul.mubr.f32.gmra.mrb[0].mxu0 %v609
    %v982 = vpop.f32.mrb[0].mxu0
    %v983 = vadd.f32 %v639, %v982
    %v984 = vpop.f32.mrb[0].mxu0
    %985 = vmatprep.mubr.f32.mxu0 0.0
    %986 = vmatmul.mubr.f32.gmra.mrb[0].mxu0 %v610
    %v987 = vpop.f32.mrb[0].mxu0
    %v988 = vadd.f32 %v639, %v987
    %v989 = vpop.f32.mrb[0].mxu0
    %990 = vmatprep.mubr.f32.mxu0 0.0
    %991 = vmatmul.mubr.f32.gmra.mrb[0].mxu0 %v611
    %v992 = vpop.f32.mrb[0].mxu0
    %v993 = vadd.f32 %v639, %v992
    %v994 = vpop.f32.mrb[0].mxu0
    %995 = vmatprep.mubr.f32.mxu0 0.0
    %996 = vmatmul.mubr.f32.gmra.mrb[0].mxu0 %v612
    %v997 = vpop.f32.mrb[0].mxu0
    %v998 = vadd.f32 %v639, %v997
    %v999 = vpop.f32.mrb[0].mxu0
    %1000 = vmatprep.mubr.f32.mxu0 0.0
    %1001 = vmatmul.mubr.f32.gmra.mrb[0].mxu0 %v613
    %v1002 = vpop.f32.mrb[0].mxu0
    %v1003 = vadd.f32 %v639, %v1002
    %v1004 = vpop.f32.mrb[0].mxu0
    %1005 = vmatprep.mubr.f32.mxu0 0.0
    %1006 = vmatmul.mubr.f32.gmra.mrb[0].mxu0 %v614
    %v1007 = vpop.f32.mrb[0].mxu0
    %v1008 = vadd.f32 %v639, %v1007
    %v1009 = vpop.f32.mrb[0].mxu0
    %1010 = vmatprep.mubr.f32.mxu0 0.0
    %1011 = vmatmul.mubr.f32.gmra.mrb[0].mxu0 %v615
    %v1012 = vpop.f32.mrb[0].mxu0
    %v1013 = vadd.f32 %v639, %v1012
    %v1014 = vpop.f32.mrb[0].mxu0
    %1015 = vmatprep.mubr.f32.mxu0 0.0
    %1016 = vmatmul.mubr.f32.gmra.mrb[0].mxu0 %v616
    %v1017 = vpop.f32.mrb[0].mxu0
    %v1018 = vadd.f32 %v639, %v1017
    %v1019 = vpop.f32.mrb[0].mxu0
    %1020 = vmatprep.mubr.f32.mxu0 0.0
    %1021 = vmatmul.mubr.f32.gmra.mrb[0].mxu0 %v617
    %v1022 = vpop.f32.mrb[0].mxu0
    %v1023 = vadd.f32 %v639, %v1022
    %v1024 = vpop.f32.mrb[0].mxu0
    %1025 = vdwg.mxu0
    %v1026 = vmax.f32 %v708, 0.0
    %v1027 = vmax.f32 %v713, 0.0
    %v1028 = vmax.f32 %v718, 0.0
    %v1029 = vmax.f32 %v723, 0.0
    %v1030 = vmax.f32 %v728, 0.0
    %v1031 = vmax.f32 %v733, 0.0
    %v1032 = vmax.f32 %v738, 0.0
    %v1033 = vmax.f32 %v743, 0.0
    %v1034 = vmax.f32 %v748, 0.0
    %v1035 = vmax.f32 %v753, 0.0
    %v1036 = vmax.f32 %v758, 0.0
    %v1037 = vmax.f32 %v763, 0.0
    %v1038 = vmax.f32 %v768, 0.0
    %v1039 = vmax.f32 %v773, 0.0
    %v1040 = vmax.f32 %v778, 0.0
    %v1041 = vmax.f32 %v783, 0.0
    %v1042 = vmax.f32 %v788, 0.0
    %v1043 = vmax.f32 %v793, 0.0
    %v1044 = vmax.f32 %v798, 0.0
    %v1045 = vmax.f32 %v803, 0.0
    %v1046 = vmax.f32 %v808, 0.0
    %v1047 = vmax.f32 %v813, 0.0
    %v1048 = vmax.f32 %v818, 0.0
    %v1049 = vmax.f32 %v823, 0.0
    %v1050 = vmax.f32 %v828, 0.0
    %v1051 = vmax.f32 %v833, 0.0
    %v1052 = vmax.f32 %v838, 0.0
    %v1053 = vmax.f32 %v843, 0.0
    %v1054 = vmax.f32 %v848, 0.0
    %v1055 = vmax.f32 %v853, 0.0
    %v1056 = vmax.f32 %v858, 0.0
    %v1057 = vmax.f32 %v863, 0.0
    %v1058 = vmax.f32 %v868, 0.0
    %v1059 = vmax.f32 %v873, 0.0
    %v1060 = vmax.f32 %v878, 0.0
    %v1061 = vmax.f32 %v883, 0.0
    %v1062 = vmax.f32 %v888, 0.0
    %v1063 = vmax.f32 %v893, 0.0
    %v1064 = vmax.f32 %v898, 0.0
    %v1065 = vmax.f32 %v903, 0.0
    %v1066 = vmax.f32 %v908, 0.0
    %v1067 = vmax.f32 %v913, 0.0
    %v1068 = vmax.f32 %v918, 0.0
    %v1069 = vmax.f32 %v923, 0.0
    %v1070 = vmax.f32 %v928, 0.0
    %v1071 = vmax.f32 %v933, 0.0
    %v1072 = vmax.f32 %v938, 0.0
    %v1073 = vmax.f32 %v943, 0.0
    %v1074 = vmax.f32 %v948, 0.0
    %v1075 = vmax.f32 %v953, 0.0
    %v1076 = vmax.f32 %v958, 0.0
    %v1077 = vmax.f32 %v963, 0.0
    %v1078 = vmax.f32 %v968, 0.0
    %v1079 = vmax.f32 %v973, 0.0
    %v1080 = vmax.f32 %v978, 0.0
    %v1081 = vmax.f32 %v983, 0.0
    %v1082 = vmax.f32 %v988, 0.0
    %v1083 = vmax.f32 %v993, 0.0
    %v1084 = vmax.f32 %v998, 0.0
    %v1085 = vmax.f32 %v1003, 0.0
    %v1086 = vmax.f32 %v1008, 0.0
    %v1087 = vmax.f32 %v1013, 0.0
    %v1088 = vmax.f32 %v1018, 0.0
    %v1089 = vmax.f32 %v1023, 0.0
    %v1090 = vld [vmem:[#allocation8] sm:$0xff]
    %v1091 = vld [vmem:[#allocation8 + $0x8] sm:$0xff]
    %v1092 = vld [vmem:[#allocation8 + $0x10] sm:$0xff]
    %v1093 = vld [vmem:[#allocation8 + $0x18] sm:$0xff]
    %v1094 = vld [vmem:[#allocation8 + $0x20] sm:$0xff]
    %v1095 = vld [vmem:[#allocation8 + $0x28] sm:$0xff]
    %v1096 = vld [vmem:[#allocation8 + $0x30] sm:$0xff]
    %v1097 = vld [vmem:[#allocation8 + $0x38] sm:$0xff]
    %v1098 = vld [vmem:[#allocation8 + $0x40] sm:$0xff]
    %v1099 = vld [vmem:[#allocation8 + $0x48] sm:$0xff]
    %v1100 = vld [vmem:[#allocation8 + $0x50] sm:$0xff]
    %v1101 = vld [vmem:[#allocation8 + $0x58] sm:$0xff]
    %v1102 = vld [vmem:[#allocation8 + $0x60] sm:$0xff]
    %v1103 = vld [vmem:[#allocation8 + $0x68] sm:$0xff]
    %v1104 = vld [vmem:[#allocation8 + $0x70] sm:$0xff]
    %v1105 = vld [vmem:[#allocation8 + $0x78] sm:$0xff]
    %v1106 = vld [vmem:[%s6] sm:$0x1]
    %v1108 = vlaneseq
    %v1109 = vshrl.u32 %v1108, 7
    %v1110 = vsub.s32 0, %v1109
    %v1111 = vrot.slane %v1106, %v1110
    %1113 = vmatprep.subr.mxu0 0.0
    %1114 = vmatpush1.msra.mxu0 %v1090
    %1115 = vmatprep.subr.mxu0 0.0
    %1116 = vmatpush1.msra.mxu0 %v1091
    %1117 = vmatprep.subr.mxu0 0.0
    %1118 = vmatpush1.msra.mxu0 %v1092
    %1119 = vmatprep.subr.mxu0 0.0
    %1120 = vmatpush1.msra.mxu0 %v1093
    %1121 = vmatprep.subr.mxu0 0.0
    %1122 = vmatpush1.msra.mxu0 %v1094
    %1123 = vmatprep.subr.mxu0 0.0
    %1124 = vmatpush1.msra.mxu0 %v1095
    %1125 = vmatprep.subr.mxu0 0.0
    %1126 = vmatpush1.msra.mxu0 %v1096
    %1127 = vmatprep.subr.mxu0 0.0
    %1128 = vmatpush1.msra.mxu0 %v1097
    %1129 = vmatprep.subr.mxu0 0.0
    %1130 = vmatpush1.msra.mxu0 %v1098
    %1131 = vmatprep.subr.mxu0 0.0
    %1132 = vmatpush1.msra.mxu0 %v1099
    %1133 = vmatprep.subr.mxu0 0.0
    %1134 = vmatpush1.msra.mxu0 %v1100
    %1135 = vmatprep.subr.mxu0 0.0
    %1136 = vmatpush1.msra.mxu0 %v1101
    %1137 = vmatprep.subr.mxu0 0.0
    %1138 = vmatpush1.msra.mxu0 %v1102
    %1139 = vmatprep.subr.mxu0 0.0
    %1140 = vmatpush1.msra.mxu0 %v1103
    %1141 = vmatprep.subr.mxu0 0.0
    %1142 = vmatpush1.msra.mxu0 %v1104
    %1143 = vmatprep.subr.mxu0 0.0
    %1144 = vmatpush1.msra.mxu0 %v1105
    %1145 = vmatprep.subr.mxu0 0.0
    %1146 = vmatpush1.msra.mxu0 0.0
    %1147 = vmatprep.subr.mxu0 0.0
    %1148 = vmatpush1.msra.mxu0 0.0
    %1149 = vmatprep.subr.mxu0 0.0
    %1150 = vmatpush1.msra.mxu0 0.0
    %1151 = vmatprep.subr.mxu0 0.0
    %1152 = vmatpush1.msra.mxu0 0.0
    %1153 = vmatprep.subr.mxu0 0.0
    %1154 = vmatpush1.msra.mxu0 0.0
    %1155 = vmatprep.subr.mxu0 0.0
    %1156 = vmatpush1.msra.mxu0 0.0
    %1157 = vmatprep.subr.mxu0 0.0
    %1158 = vmatpush1.msra.mxu0 0.0
    %1159 = vmatprep.subr.mxu0 0.0
    %1160 = vmatpush1.msra.mxu0 0.0
    %1161 = vmatprep.subr.mxu0 0.0
    %1162 = vmatpush1.msra.mxu0 0.0
    %1163 = vmatprep.subr.mxu0 0.0
    %1164 = vmatpush1.msra.mxu0 0.0
    %1165 = vmatprep.subr.mxu0 0.0
    %1166 = vmatpush1.msra.mxu0 0.0
    %1167 = vmatprep.subr.mxu0 0.0
    %1168 = vmatpush1.msra.mxu0 0.0
    %1169 = vmatprep.subr.mxu0 0.0
    %1170 = vmatpush1.msra.mxu0 0.0
    %1171 = vmatprep.subr.mxu0 0.0
    %1172 = vmatpush1.msra.mxu0 0.0
    %1173 = vmatprep.subr.mxu0 0.0
    %1174 = vmatpush1.msra.mxu0 0.0
    %1175 = vmatprep.subr.mxu0 0.0
    %1176 = vmatpush1.msra.mxu0 0.0
    %1177 = vmatprep.mubr.f32.mxu0 0.0
    %1178 = vmatmul.mubr.f32.gmra.mrb[0].mxu0 %v1026
    %v1179 = vpop.f32.mrb[0].mxu0
    %v1180 = vadd.f32 %v1111, %v1179
    %v1181 = vpop.f32.mrb[0].mxu0
    %1182 = vmatprep.mubr.f32.mxu0 0.0
    %1183 = vmatmul.mubr.f32.gmra.mrb[0].mxu0 %v1027
    %v1184 = vpop.f32.mrb[0].mxu0
    %v1185 = vadd.f32 %v1111, %v1184
    %v1186 = vpop.f32.mrb[0].mxu0
    %1187 = vmatprep.mubr.f32.mxu0 0.0
    %1188 = vmatmul.mubr.f32.gmra.mrb[0].mxu0 %v1028
    %v1189 = vpop.f32.mrb[0].mxu0
    %v1190 = vadd.f32 %v1111, %v1189
    %v1191 = vpop.f32.mrb[0].mxu0
    %1192 = vmatprep.mubr.f32.mxu0 0.0
    %1193 = vmatmul.mubr.f32.gmra.mrb[0].mxu0 %v1029
    %v1194 = vpop.f32.mrb[0].mxu0
    %v1195 = vadd.f32 %v1111, %v1194
    %v1196 = vpop.f32.mrb[0].mxu0
    %1197 = vmatprep.mubr.f32.mxu0 0.0
    %1198 = vmatmul.mubr.f32.gmra.mrb[0].mxu0 %v1030
    %v1199 = vpop.f32.mrb[0].mxu0
    %v1200 = vadd.f32 %v1111, %v1199
    %v1201 = vpop.f32.mrb[0].mxu0
    %1202 = vmatprep.mubr.f32.mxu0 0.0
    %1203 = vmatmul.mubr.f32.gmra.mrb[0].mxu0 %v1031
    %v1204 = vpop.f32.mrb[0].mxu0
    %v1205 = vadd.f32 %v1111, %v1204
    %v1206 = vpop.f32.mrb[0].mxu0
    %1207 = vmatprep.mubr.f32.mxu0 0.0
    %1208 = vmatmul.mubr.f32.gmra.mrb[0].mxu0 %v1032
    %v1209 = vpop.f32.mrb[0].mxu0
    %v1210 = vadd.f32 %v1111, %v1209
    %v1211 = vpop.f32.mrb[0].mxu0
    %1212 = vmatprep.mubr.f32.mxu0 0.0
    %1213 = vmatmul.mubr.f32.gmra.mrb[0].mxu0 %v1033
    %v1214 = vpop.f32.mrb[0].mxu0
    %v1215 = vadd.f32 %v1111, %v1214
    %v1216 = vpop.f32.mrb[0].mxu0
    %1217 = vmatprep.mubr.f32.mxu0 0.0
    %1218 = vmatmul.mubr.f32.gmra.mrb[0].mxu0 %v1034
    %v1219 = vpop.f32.mrb[0].mxu0
    %v1220 = vadd.f32 %v1111, %v1219
    %v1221 = vpop.f32.mrb[0].mxu0
    %1222 = vmatprep.mubr.f32.mxu0 0.0
    %1223 = vmatmul.mubr.f32.gmra.mrb[0].mxu0 %v1035
    %v1224 = vpop.f32.mrb[0].mxu0
    %v1225 = vadd.f32 %v1111, %v1224
    %v1226 = vpop.f32.mrb[0].mxu0
    %1227 = vmatprep.mubr.f32.mxu0 0.0
    %1228 = vmatmul.mubr.f32.gmra.mrb[0].mxu0 %v1036
    %v1229 = vpop.f32.mrb[0].mxu0
    %v1230 = vadd.f32 %v1111, %v1229
    %v1231 = vpop.f32.mrb[0].mxu0
    %1232 = vmatprep.mubr.f32.mxu0 0.0
    %1233 = vmatmul.mubr.f32.gmra.mrb[0].mxu0 %v1037
    %v1234 = vpop.f32.mrb[0].mxu0
    %v1235 = vadd.f32 %v1111, %v1234
    %v1236 = vpop.f32.mrb[0].mxu0
    %1237 = vmatprep.mubr.f32.mxu0 0.0
    %1238 = vmatmul.mubr.f32.gmra.mrb[0].mxu0 %v1038
    %v1239 = vpop.f32.mrb[0].mxu0
    %v1240 = vadd.f32 %v1111, %v1239
    %v1241 = vpop.f32.mrb[0].mxu0
    %1242 = vmatprep.mubr.f32.mxu0 0.0
    %1243 = vmatmul.mubr.f32.gmra.mrb[0].mxu0 %v1039
    %v1244 = vpop.f32.mrb[0].mxu0
    %v1245 = vadd.f32 %v1111, %v1244
    %v1246 = vpop.f32.mrb[0].mxu0
    %1247 = vmatprep.mubr.f32.mxu0 0.0
    %1248 = vmatmul.mubr.f32.gmra.mrb[0].mxu0 %v1040
    %v1249 = vpop.f32.mrb[0].mxu0
    %v1250 = vadd.f32 %v1111, %v1249
    %v1251 = vpop.f32.mrb[0].mxu0
    %1252 = vmatprep.mubr.f32.mxu0 0.0
    %1253 = vmatmul.mubr.f32.gmra.mrb[0].mxu0 %v1041
    %v1254 = vpop.f32.mrb[0].mxu0
    %v1255 = vadd.f32 %v1111, %v1254
    %v1256 = vpop.f32.mrb[0].mxu0
    %1257 = vmatprep.mubr.f32.mxu0 0.0
    %1258 = vmatmul.mubr.f32.gmra.mrb[0].mxu0 %v1042
    %v1259 = vpop.f32.mrb[0].mxu0
    %v1260 = vadd.f32 %v1111, %v1259
    %v1261 = vpop.f32.mrb[0].mxu0
    %1262 = vmatprep.mubr.f32.mxu0 0.0
    %1263 = vmatmul.mubr.f32.gmra.mrb[0].mxu0 %v1043
    %v1264 = vpop.f32.mrb[0].mxu0
    %v1265 = vadd.f32 %v1111, %v1264
    %v1266 = vpop.f32.mrb[0].mxu0
    %1267 = vmatprep.mubr.f32.mxu0 0.0
    %1268 = vmatmul.mubr.f32.gmra.mrb[0].mxu0 %v1044
    %v1269 = vpop.f32.mrb[0].mxu0
    %v1270 = vadd.f32 %v1111, %v1269
    %v1271 = vpop.f32.mrb[0].mxu0
    %1272 = vmatprep.mubr.f32.mxu0 0.0
    %1273 = vmatmul.mubr.f32.gmra.mrb[0].mxu0 %v1045
    %v1274 = vpop.f32.mrb[0].mxu0
    %v1275 = vadd.f32 %v1111, %v1274
    %v1276 = vpop.f32.mrb[0].mxu0
    %1277 = vmatprep.mubr.f32.mxu0 0.0
    %1278 = vmatmul.mubr.f32.gmra.mrb[0].mxu0 %v1046
    %v1279 = vpop.f32.mrb[0].mxu0
    %v1280 = vadd.f32 %v1111, %v1279
    %v1281 = vpop.f32.mrb[0].mxu0
    %1282 = vmatprep.mubr.f32.mxu0 0.0
    %1283 = vmatmul.mubr.f32.gmra.mrb[0].mxu0 %v1047
    %v1284 = vpop.f32.mrb[0].mxu0
    %v1285 = vadd.f32 %v1111, %v1284
    %v1286 = vpop.f32.mrb[0].mxu0
    %1287 = vmatprep.mubr.f32.mxu0 0.0
    %1288 = vmatmul.mubr.f32.gmra.mrb[0].mxu0 %v1048
    %v1289 = vpop.f32.mrb[0].mxu0
    %v1290 = vadd.f32 %v1111, %v1289
    %v1291 = vpop.f32.mrb[0].mxu0
    %1292 = vmatprep.mubr.f32.mxu0 0.0
    %1293 = vmatmul.mubr.f32.gmra.mrb[0].mxu0 %v1049
    %v1294 = vpop.f32.mrb[0].mxu0
    %v1295 = vadd.f32 %v1111, %v1294
    %v1296 = vpop.f32.mrb[0].mxu0
    %1297 = vmatprep.mubr.f32.mxu0 0.0
    %1298 = vmatmul.mubr.f32.gmra.mrb[0].mxu0 %v1050
    %v1299 = vpop.f32.mrb[0].mxu0
    %v1300 = vadd.f32 %v1111, %v1299
    %v1301 = vpop.f32.mrb[0].mxu0
    %1302 = vmatprep.mubr.f32.mxu0 0.0
    %1303 = vmatmul.mubr.f32.gmra.mrb[0].mxu0 %v1051
    %v1304 = vpop.f32.mrb[0].mxu0
    %v1305 = vadd.f32 %v1111, %v1304
    %v1306 = vpop.f32.mrb[0].mxu0
    %1307 = vmatprep.mubr.f32.mxu0 0.0
    %1308 = vmatmul.mubr.f32.gmra.mrb[0].mxu0 %v1052
    %v1309 = vpop.f32.mrb[0].mxu0
    %v1310 = vadd.f32 %v1111, %v1309
    %v1311 = vpop.f32.mrb[0].mxu0
    %1312 = vmatprep.mubr.f32.mxu0 0.0
    %1313 = vmatmul.mubr.f32.gmra.mrb[0].mxu0 %v1053
    %v1314 = vpop.f32.mrb[0].mxu0
    %v1315 = vadd.f32 %v1111, %v1314
    %v1316 = vpop.f32.mrb[0].mxu0
    %1317 = vmatprep.mubr.f32.mxu0 0.0
    %1318 = vmatmul.mubr.f32.gmra.mrb[0].mxu0 %v1054
    %v1319 = vpop.f32.mrb[0].mxu0
    %v1320 = vadd.f32 %v1111, %v1319
    %v1321 = vpop.f32.mrb[0].mxu0
    %1322 = vmatprep.mubr.f32.mxu0 0.0
    %1323 = vmatmul.mubr.f32.gmra.mrb[0].mxu0 %v1055
    %v1324 = vpop.f32.mrb[0].mxu0
    %v1325 = vadd.f32 %v1111, %v1324
    %v1326 = vpop.f32.mrb[0].mxu0
    %1327 = vmatprep.mubr.f32.mxu0 0.0
    %1328 = vmatmul.mubr.f32.gmra.mrb[0].mxu0 %v1056
    %v1329 = vpop.f32.mrb[0].mxu0
    %v1330 = vadd.f32 %v1111, %v1329
    %v1331 = vpop.f32.mrb[0].mxu0
    %1332 = vmatprep.mubr.f32.mxu0 0.0
    %1333 = vmatmul.mubr.f32.gmra.mrb[0].mxu0 %v1057
    %v1334 = vpop.f32.mrb[0].mxu0
    %v1335 = vadd.f32 %v1111, %v1334
    %v1336 = vpop.f32.mrb[0].mxu0
    %1337 = vmatprep.mubr.f32.mxu0 0.0
    %1338 = vmatmul.mubr.f32.gmra.mrb[0].mxu0 %v1058
    %v1339 = vpop.f32.mrb[0].mxu0
    %v1340 = vadd.f32 %v1111, %v1339
    %v1341 = vpop.f32.mrb[0].mxu0
    %1342 = vmatprep.mubr.f32.mxu0 0.0
    %1343 = vmatmul.mubr.f32.gmra.mrb[0].mxu0 %v1059
    %v1344 = vpop.f32.mrb[0].mxu0
    %v1345 = vadd.f32 %v1111, %v1344
    %v1346 = vpop.f32.mrb[0].mxu0
    %1347 = vmatprep.mubr.f32.mxu0 0.0
    %1348 = vmatmul.mubr.f32.gmra.mrb[0].mxu0 %v1060
    %v1349 = vpop.f32.mrb[0].mxu0
    %v1350 = vadd.f32 %v1111, %v1349
    %v1351 = vpop.f32.mrb[0].mxu0
    %1352 = vmatprep.mubr.f32.mxu0 0.0
    %1353 = vmatmul.mubr.f32.gmra.mrb[0].mxu0 %v1061
    %v1354 = vpop.f32.mrb[0].mxu0
    %v1355 = vadd.f32 %v1111, %v1354
    %v1356 = vpop.f32.mrb[0].mxu0
    %1357 = vmatprep.mubr.f32.mxu0 0.0
    %1358 = vmatmul.mubr.f32.gmra.mrb[0].mxu0 %v1062
    %v1359 = vpop.f32.mrb[0].mxu0
    %v1360 = vadd.f32 %v1111, %v1359
    %v1361 = vpop.f32.mrb[0].mxu0
    %1362 = vmatprep.mubr.f32.mxu0 0.0
    %1363 = vmatmul.mubr.f32.gmra.mrb[0].mxu0 %v1063
    %v1364 = vpop.f32.mrb[0].mxu0
    %v1365 = vadd.f32 %v1111, %v1364
    %v1366 = vpop.f32.mrb[0].mxu0
    %1367 = vmatprep.mubr.f32.mxu0 0.0
    %1368 = vmatmul.mubr.f32.gmra.mrb[0].mxu0 %v1064
    %v1369 = vpop.f32.mrb[0].mxu0
    %v1370 = vadd.f32 %v1111, %v1369
    %v1371 = vpop.f32.mrb[0].mxu0
    %1372 = vmatprep.mubr.f32.mxu0 0.0
    %1373 = vmatmul.mubr.f32.gmra.mrb[0].mxu0 %v1065
    %v1374 = vpop.f32.mrb[0].mxu0
    %v1375 = vadd.f32 %v1111, %v1374
    %v1376 = vpop.f32.mrb[0].mxu0
    %1377 = vmatprep.mubr.f32.mxu0 0.0
    %1378 = vmatmul.mubr.f32.gmra.mrb[0].mxu0 %v1066
    %v1379 = vpop.f32.mrb[0].mxu0
    %v1380 = vadd.f32 %v1111, %v1379
    %v1381 = vpop.f32.mrb[0].mxu0
    %1382 = vmatprep.mubr.f32.mxu0 0.0
    %1383 = vmatmul.mubr.f32.gmra.mrb[0].mxu0 %v1067
    %v1384 = vpop.f32.mrb[0].mxu0
    %v1385 = vadd.f32 %v1111, %v1384
    %v1386 = vpop.f32.mrb[0].mxu0
    %1387 = vmatprep.mubr.f32.mxu0 0.0
    %1388 = vmatmul.mubr.f32.gmra.mrb[0].mxu0 %v1068
    %v1389 = vpop.f32.mrb[0].mxu0
    %v1390 = vadd.f32 %v1111, %v1389
    %v1391 = vpop.f32.mrb[0].mxu0
    %1392 = vmatprep.mubr.f32.mxu0 0.0
    %1393 = vmatmul.mubr.f32.gmra.mrb[0].mxu0 %v1069
    %v1394 = vpop.f32.mrb[0].mxu0
    %v1395 = vadd.f32 %v1111, %v1394
    %v1396 = vpop.f32.mrb[0].mxu0
    %1397 = vmatprep.mubr.f32.mxu0 0.0
    %1398 = vmatmul.mubr.f32.gmra.mrb[0].mxu0 %v1070
    %v1399 = vpop.f32.mrb[0].mxu0
    %v1400 = vadd.f32 %v1111, %v1399
    %v1401 = vpop.f32.mrb[0].mxu0
    %1402 = vmatprep.mubr.f32.mxu0 0.0
    %1403 = vmatmul.mubr.f32.gmra.mrb[0].mxu0 %v1071
    %v1404 = vpop.f32.mrb[0].mxu0
    %v1405 = vadd.f32 %v1111, %v1404
    %v1406 = vpop.f32.mrb[0].mxu0
    %1407 = vmatprep.mubr.f32.mxu0 0.0
    %1408 = vmatmul.mubr.f32.gmra.mrb[0].mxu0 %v1072
    %v1409 = vpop.f32.mrb[0].mxu0
    %v1410 = vadd.f32 %v1111, %v1409
    %v1411 = vpop.f32.mrb[0].mxu0
    %1412 = vmatprep.mubr.f32.mxu0 0.0
    %1413 = vmatmul.mubr.f32.gmra.mrb[0].mxu0 %v1073
    %v1414 = vpop.f32.mrb[0].mxu0
    %v1415 = vadd.f32 %v1111, %v1414
    %v1416 = vpop.f32.mrb[0].mxu0
    %1417 = vmatprep.mubr.f32.mxu0 0.0
    %1418 = vmatmul.mubr.f32.gmra.mrb[0].mxu0 %v1074
    %v1419 = vpop.f32.mrb[0].mxu0
    %v1420 = vadd.f32 %v1111, %v1419
    %v1421 = vpop.f32.mrb[0].mxu0
    %1422 = vmatprep.mubr.f32.mxu0 0.0
    %1423 = vmatmul.mubr.f32.gmra.mrb[0].mxu0 %v1075
    %v1424 = vpop.f32.mrb[0].mxu0
    %v1425 = vadd.f32 %v1111, %v1424
    %v1426 = vpop.f32.mrb[0].mxu0
    %1427 = vmatprep.mubr.f32.mxu0 0.0
    %1428 = vmatmul.mubr.f32.gmra.mrb[0].mxu0 %v1076
    %v1429 = vpop.f32.mrb[0].mxu0
    %v1430 = vadd.f32 %v1111, %v1429
    %v1431 = vpop.f32.mrb[0].mxu0
    %1432 = vmatprep.mubr.f32.mxu0 0.0
    %1433 = vmatmul.mubr.f32.gmra.mrb[0].mxu0 %v1077
    %v1434 = vpop.f32.mrb[0].mxu0
    %v1435 = vadd.f32 %v1111, %v1434
    %v1436 = vpop.f32.mrb[0].mxu0
    %1437 = vmatprep.mubr.f32.mxu0 0.0
    %1438 = vmatmul.mubr.f32.gmra.mrb[0].mxu0 %v1078
    %v1439 = vpop.f32.mrb[0].mxu0
    %v1440 = vadd.f32 %v1111, %v1439
    %v1441 = vpop.f32.mrb[0].mxu0
    %1442 = vmatprep.mubr.f32.mxu0 0.0
    %1443 = vmatmul.mubr.f32.gmra.mrb[0].mxu0 %v1079
    %v1444 = vpop.f32.mrb[0].mxu0
    %v1445 = vadd.f32 %v1111, %v1444
    %v1446 = vpop.f32.mrb[0].mxu0
    %1447 = vmatprep.mubr.f32.mxu0 0.0
    %1448 = vmatmul.mubr.f32.gmra.mrb[0].mxu0 %v1080
    %v1449 = vpop.f32.mrb[0].mxu0
    %v1450 = vadd.f32 %v1111, %v1449
    %v1451 = vpop.f32.mrb[0].mxu0
    %1452 = vmatprep.mubr.f32.mxu0 0.0
    %1453 = vmatmul.mubr.f32.gmra.mrb[0].mxu0 %v1081
    %v1454 = vpop.f32.mrb[0].mxu0
    %v1455 = vadd.f32 %v1111, %v1454
    %v1456 = vpop.f32.mrb[0].mxu0
    %1457 = vmatprep.mubr.f32.mxu0 0.0
    %1458 = vmatmul.mubr.f32.gmra.mrb[0].mxu0 %v1082
    %v1459 = vpop.f32.mrb[0].mxu0
    %v1460 = vadd.f32 %v1111, %v1459
    %v1461 = vpop.f32.mrb[0].mxu0
    %1462 = vmatprep.mubr.f32.mxu0 0.0
    %1463 = vmatmul.mubr.f32.gmra.mrb[0].mxu0 %v1083
    %v1464 = vpop.f32.mrb[0].mxu0
    %v1465 = vadd.f32 %v1111, %v1464
    %v1466 = vpop.f32.mrb[0].mxu0
    %1467 = vmatprep.mubr.f32.mxu0 0.0
    %1468 = vmatmul.mubr.f32.gmra.mrb[0].mxu0 %v1084
    %v1469 = vpop.f32.mrb[0].mxu0
    %v1470 = vadd.f32 %v1111, %v1469
    %v1471 = vpop.f32.mrb[0].mxu0
    %1472 = vmatprep.mubr.f32.mxu0 0.0
    %1473 = vmatmul.mubr.f32.gmra.mrb[0].mxu0 %v1085
    %v1474 = vpop.f32.mrb[0].mxu0
    %v1475 = vadd.f32 %v1111, %v1474
    %v1476 = vpop.f32.mrb[0].mxu0
    %1477 = vmatprep.mubr.f32.mxu0 0.0
    %1478 = vmatmul.mubr.f32.gmra.mrb[0].mxu0 %v1086
    %v1479 = vpop.f32.mrb[0].mxu0
    %v1480 = vadd.f32 %v1111, %v1479
    %v1481 = vpop.f32.mrb[0].mxu0
    %1482 = vmatprep.mubr.f32.mxu0 0.0
    %1483 = vmatmul.mubr.f32.gmra.mrb[0].mxu0 %v1087
    %v1484 = vpop.f32.mrb[0].mxu0
    %v1485 = vadd.f32 %v1111, %v1484
    %v1486 = vpop.f32.mrb[0].mxu0
    %1487 = vmatprep.mubr.f32.mxu0 0.0
    %1488 = vmatmul.mubr.f32.gmra.mrb[0].mxu0 %v1088
    %v1489 = vpop.f32.mrb[0].mxu0
    %v1490 = vadd.f32 %v1111, %v1489
    %v1491 = vpop.f32.mrb[0].mxu0
    %1492 = vmatprep.mubr.f32.mxu0 0.0
    %1493 = vmatmul.mubr.f32.gmra.mrb[0].mxu0 %v1089
    %v1494 = vpop.f32.mrb[0].mxu0
    %v1495 = vadd.f32 %v1111, %v1494
    %v1496 = vpop.f32.mrb[0].mxu0
    %1497 = vdwg.mxu0
    %v1498 = vmax.f32 %v1180, 0.0
    %v1499 = vmax.f32 %v1185, 0.0
    %v1500 = vmax.f32 %v1190, 0.0
    %v1501 = vmax.f32 %v1195, 0.0
    %v1502 = vmax.f32 %v1200, 0.0
    %v1503 = vmax.f32 %v1205, 0.0
    %v1504 = vmax.f32 %v1210, 0.0
    %v1505 = vmax.f32 %v1215, 0.0
    %v1506 = vmax.f32 %v1220, 0.0
    %v1507 = vmax.f32 %v1225, 0.0
    %v1508 = vmax.f32 %v1230, 0.0
    %v1509 = vmax.f32 %v1235, 0.0
    %v1510 = vmax.f32 %v1240, 0.0
    %v1511 = vmax.f32 %v1245, 0.0
    %v1512 = vmax.f32 %v1250, 0.0
    %v1513 = vmax.f32 %v1255, 0.0
    %v1514 = vmax.f32 %v1260, 0.0
    %v1515 = vmax.f32 %v1265, 0.0
    %v1516 = vmax.f32 %v1270, 0.0
    %v1517 = vmax.f32 %v1275, 0.0
    %v1518 = vmax.f32 %v1280, 0.0
    %v1519 = vmax.f32 %v1285, 0.0
    %v1520 = vmax.f32 %v1290, 0.0
    %v1521 = vmax.f32 %v1295, 0.0
    %v1522 = vmax.f32 %v1300, 0.0
    %v1523 = vmax.f32 %v1305, 0.0
    %v1524 = vmax.f32 %v1310, 0.0
    %v1525 = vmax.f32 %v1315, 0.0
    %v1526 = vmax.f32 %v1320, 0.0
    %v1527 = vmax.f32 %v1325, 0.0
    %v1528 = vmax.f32 %v1330, 0.0
    %v1529 = vmax.f32 %v1335, 0.0
    %v1530 = vmax.f32 %v1340, 0.0
    %v1531 = vmax.f32 %v1345, 0.0
    %v1532 = vmax.f32 %v1350, 0.0
    %v1533 = vmax.f32 %v1355, 0.0
    %v1534 = vmax.f32 %v1360, 0.0
    %v1535 = vmax.f32 %v1365, 0.0
    %v1536 = vmax.f32 %v1370, 0.0
    %v1537 = vmax.f32 %v1375, 0.0
    %v1538 = vmax.f32 %v1380, 0.0
    %v1539 = vmax.f32 %v1385, 0.0
    %v1540 = vmax.f32 %v1390, 0.0
    %v1541 = vmax.f32 %v1395, 0.0
    %v1542 = vmax.f32 %v1400, 0.0
    %v1543 = vmax.f32 %v1405, 0.0
    %v1544 = vmax.f32 %v1410, 0.0
    %v1545 = vmax.f32 %v1415, 0.0
    %v1546 = vmax.f32 %v1420, 0.0
    %v1547 = vmax.f32 %v1425, 0.0
    %v1548 = vmax.f32 %v1430, 0.0
    %v1549 = vmax.f32 %v1435, 0.0
    %v1550 = vmax.f32 %v1440, 0.0
    %v1551 = vmax.f32 %v1445, 0.0
    %v1552 = vmax.f32 %v1450, 0.0
    %v1553 = vmax.f32 %v1455, 0.0
    %v1554 = vmax.f32 %v1460, 0.0
    %v1555 = vmax.f32 %v1465, 0.0
    %v1556 = vmax.f32 %v1470, 0.0
    %v1557 = vmax.f32 %v1475, 0.0
    %v1558 = vmax.f32 %v1480, 0.0
    %v1559 = vmax.f32 %v1485, 0.0
    %v1560 = vmax.f32 %v1490, 0.0
    %v1561 = vmax.f32 %v1495, 0.0
    %1562 = vst [vmem:[#allocation10] sm:$0xff] %v1498
    %1563 = vst [vmem:[#allocation10 + $0x8] sm:$0xff] %v1499
    %1564 = vst [vmem:[#allocation10 + $0x10] sm:$0xff] %v1500
    %1565 = vst [vmem:[#allocation10 + $0x18] sm:$0xff] %v1501
    %1566 = vst [vmem:[#allocation10 + $0x20] sm:$0xff] %v1502
    %1567 = vst [vmem:[#allocation10 + $0x28] sm:$0xff] %v1503
    %1568 = vst [vmem:[#allocation10 + $0x30] sm:$0xff] %v1504
    %1569 = vst [vmem:[#allocation10 + $0x38] sm:$0xff] %v1505
    %1570 = vst [vmem:[#allocation10 + $0x40] sm:$0xff] %v1506
    %1571 = vst [vmem:[#allocation10 + $0x48] sm:$0xff] %v1507
    %1572 = vst [vmem:[#allocation10 + $0x50] sm:$0xff] %v1508
    %1573 = vst [vmem:[#allocation10 + $0x58] sm:$0xff] %v1509
    %1574 = vst [vmem:[#allocation10 + $0x60] sm:$0xff] %v1510
    %1575 = vst [vmem:[#allocation10 + $0x68] sm:$0xff] %v1511
    %1576 = vst [vmem:[#allocation10 + $0x70] sm:$0xff] %v1512
    %1577 = vst [vmem:[#allocation10 + $0x78] sm:$0xff] %v1513
    %1578 = vst [vmem:[#allocation10 + $0x80] sm:$0xff] %v1514
    %1579 = vst [vmem:[#allocation10 + $0x88] sm:$0xff] %v1515
    %1580 = vst [vmem:[#allocation10 + $0x90] sm:$0xff] %v1516
    %1581 = vst [vmem:[#allocation10 + $0x98] sm:$0xff] %v1517
    %1582 = vst [vmem:[#allocation10 + $0xa0] sm:$0xff] %v1518
    %1583 = vst [vmem:[#allocation10 + $0xa8] sm:$0xff] %v1519
    %1584 = vst [vmem:[#allocation10 + $0xb0] sm:$0xff] %v1520
    %1585 = vst [vmem:[#allocation10 + $0xb8] sm:$0xff] %v1521
    %1586 = vst [vmem:[#allocation10 + $0xc0] sm:$0xff] %v1522
    %1587 = vst [vmem:[#allocation10 + $0xc8] sm:$0xff] %v1523
    %1588 = vst [vmem:[#allocation10 + $0xd0] sm:$0xff] %v1524
    %1589 = vst [vmem:[#allocation10 + $0xd8] sm:$0xff] %v1525
    %1590 = vst [vmem:[#allocation10 + $0xe0] sm:$0xff] %v1526
    %1591 = vst [vmem:[#allocation10 + $0xe8] sm:$0xff] %v1527
    %1592 = vst [vmem:[#allocation10 + $0xf0] sm:$0xff] %v1528
    %1593 = vst [vmem:[#allocation10 + $0xf8] sm:$0xff] %v1529
    %1594 = vst [vmem:[#allocation10 + $0x100] sm:$0xff] %v1530
    %1595 = vst [vmem:[#allocation10 + $0x108] sm:$0xff] %v1531
    %1596 = vst [vmem:[#allocation10 + $0x110] sm:$0xff] %v1532
    %1597 = vst [vmem:[#allocation10 + $0x118] sm:$0xff] %v1533
    %1598 = vst [vmem:[#allocation10 + $0x120] sm:$0xff] %v1534
    %1599 = vst [vmem:[#allocation10 + $0x128] sm:$0xff] %v1535
    %1600 = vst [vmem:[#allocation10 + $0x130] sm:$0xff] %v1536
    %1601 = vst [vmem:[#allocation10 + $0x138] sm:$0xff] %v1537
    %1602 = vst [vmem:[#allocation10 + $0x140] sm:$0xff] %v1538
    %1603 = vst [vmem:[#allocation10 + $0x148] sm:$0xff] %v1539
    %1604 = vst [vmem:[#allocation10 + $0x150] sm:$0xff] %v1540
    %1605 = vst [vmem:[#allocation10 + $0x158] sm:$0xff] %v1541
    %1606 = vst [vmem:[#allocation10 + $0x160] sm:$0xff] %v1542
    %1607 = vst [vmem:[#allocation10 + $0x168] sm:$0xff] %v1543
    %1608 = vst [vmem:[#allocation10 + $0x170] sm:$0xff] %v1544
    %1609 = vst [vmem:[#allocation10 + $0x178] sm:$0xff] %v1545
    %1610 = vst [vmem:[#allocation10 + $0x180] sm:$0xff] %v1546
    %1611 = vst [vmem:[#allocation10 + $0x188] sm:$0xff] %v1547
    %1612 = vst [vmem:[#allocation10 + $0x190] sm:$0xff] %v1548
    %1613 = vst [vmem:[#allocation10 + $0x198] sm:$0xff] %v1549
    %1614 = vst [vmem:[#allocation10 + $0x1a0] sm:$0xff] %v1550
    %1615 = vst [vmem:[#allocation10 + $0x1a8] sm:$0xff] %v1551
    %1616 = vst [vmem:[#allocation10 + $0x1b0] sm:$0xff] %v1552
    %1617 = vst [vmem:[#allocation10 + $0x1b8] sm:$0xff] %v1553
    %1618 = vst [vmem:[#allocation10 + $0x1c0] sm:$0xff] %v1554
    %1619 = vst [vmem:[#allocation10 + $0x1c8] sm:$0xff] %v1555
    %1620 = vst [vmem:[#allocation10 + $0x1d0] sm:$0xff] %v1556
    %1621 = vst [vmem:[#allocation10 + $0x1d8] sm:$0xff] %v1557
    %1622 = vst [vmem:[#allocation10 + $0x1e0] sm:$0xff] %v1558
    %1623 = vst [vmem:[#allocation10 + $0x1e8] sm:$0xff] %v1559
    %1624 = vst [vmem:[#allocation10 + $0x1f0] sm:$0xff] %v1560
    %1625 = vst [vmem:[#allocation10 + $0x1f8] sm:$0xff] %v1561
    // Predicated region
    $region46: #{tpu_custom_call.1} parent=1 // pred_check
      _
    $region47: #{tpu_custom_call.1} parent=1 // pred_check_branch
      %1627 = sbr.rel (0) target = $region49
    $region48: #{tpu_custom_call.1} parent=1 // pred_region
      %s1629 = ssub.s32 8192, 8192
      %1630 = vsyncadd [#allocation4], %s1629
      %s1631 = sshll.u32 [#allocation10], 4
      %s1632 = int_to_ptr.vmem [resolvable:$true] %s1631
      %1637 = dma.vmem_to_hbm [thread:$0]  %s1632, 8192, %s7, [#allocation4], 128, 128, 8
    $region49: #{tpu_custom_call.1} parent=1 // pred_fallthru
      _
    // Predicated region
    $region50: #{tpu_custom_call.1} parent=1 // pred_check
      _
    $region51: #{tpu_custom_call.1} parent=1 // pred_check_branch
      %1639 = sbr.rel (0) target = $region53
    $region52: #{tpu_custom_call.1} parent=1 // pred_region
      %1640 = dma.done [#allocation4], 8192
    $region53: #{tpu_custom_call.1} parent=1 // pred_fallthru
      _
    %1641 = vsyncpa [#allocation3], 1
    %1642 = vsyncpa [#allocation6], 1
    %1643 = vsyncpa [#allocation9], 1
    %1644 = vsyncpa [#allocation4], 1

</llo_original>
